<compile_context>
chip_gen: v7x
topology: tpu7x:2x2x1
jax: 0.10.0
libtpu: 0.0.40
codegen_flags: <defaults>
</compile_context>

<pallas_src>
import jax
import jax.numpy as jnp
from jax import lax
from jax.experimental import pallas as pl
from jax.experimental.pallas import tpu as pltpu


def _lstm_head_kernel(x_ref, wih_ref, whh_ref, b_ref, wo_ref, bo_ref,
                      out_ref, gates_scr):
    # x_ref:     [T*Bp, I]      bf16  (time-major, batch zero-padded to Bp)
    # wih_ref:   [I, 4*HP]      bf16  (gates reordered to i,f,o,g; lane-padded)
    # whh_ref:   [HP, 4*HP]     bf16
    # b_ref:     [1, 4*HP]      f32   (b_ih + b_hh, reordered / padded)
    # wo_ref:    [HP, A]        f32   (head kept in f32; it is tiny)
    # bo_ref:    [1, A]         f32
    # out_ref:   [B, A]         f32
    # gates_scr: [T, Bp, 4*HP]  f32
    T, Bp, G4 = gates_scr.shape
    HP = whh_ref.shape[0]
    B = out_ref.shape[0]

    # --- One MXU call: input projection for ALL timesteps, bias folded in.
    proj = jnp.dot(x_ref[...], wih_ref[...],
                   preferred_element_type=jnp.float32) + b_ref[...]
    gates_scr[...] = proj.reshape(T, Bp, G4)

    # Hoist the recurrent weight load out of the loop.
    whh = whh_ref[...]                                  # [HP, 4*HP] bf16

    h0 = jnp.zeros((Bp, HP), jnp.float32)
    c0 = jnp.zeros((Bp, HP), jnp.float32)

    def step(t, carry):
        h, c = carry
        # Aligned [Bp, 4*HP] load of this step's precomputed gates, issued
        # before (and hidden under) the h-dependent recurrent matmul.
        g = gates_scr[t] + jnp.dot(h.astype(whh.dtype), whh,
                                   preferred_element_type=jnp.float32)
        # Gate layout is (i, f, o, g): one wide sigmoid + one tanh per step.
        sig = jax.nn.sigmoid(g[:, :3 * HP])
        i_g = sig[:, 0 * HP:1 * HP]
        f_g = sig[:, 1 * HP:2 * HP]
        o_g = sig[:, 2 * HP:3 * HP]
        g_g = jnp.tanh(g[:, 3 * HP:4 * HP])
        c_new = f_g * c + i_g * g_g
        h_new = o_g * jnp.tanh(c_new)
        return h_new, c_new

    unroll = True if T <= 16 else 8
    h_fin, _ = lax.fori_loop(0, T, step, (h0, c0), unroll=unroll)

    # Linear head (f32) on the final hidden state, softmax over assets.
    logits = jnp.dot(h_fin, wo_ref[...],
                     preferred_element_type=jnp.float32) + bo_ref[...]  # [Bp, A]
    logits = logits[:B, :]                                              # real rows
    m = jnp.max(logits, axis=1, keepdims=True)
    e = jnp.exp(logits - m)
    out_ref[...] = e / jnp.sum(e, axis=1, keepdims=True)   # exact normalization


def portfolio_lstm_forward(x, params, mxu_dtype=jnp.bfloat16):
    """x: [B, T, I] float32 (batch_first). Returns portfolio weights [B, A]."""
    w_ih, w_hh, b_ih, b_hh, w_lin, b_lin = params
    B, T, I = x.shape
    H = w_hh.shape[1]
    A = w_lin.shape[0]
    # Per-gate lane padding (no-op when H is already a multiple of 128). For
    # H=64 this doubles the recurrent MXU column passes, but at small B the
    # aligned 128-lane gate slices on the serial chain are worth more.
    HP = ((H + 127) // 128) * 128
    Bp = ((max(B, 8) + 7) // 8) * 8          # batch padded to the f32 sublane tile

    # ---- layout plumbing only (transpose / zero-pad / gate reorder / cast) ----
    x_tm = jnp.transpose(x, (1, 0, 2))                           # [T, B, I]
    x_p = jnp.pad(x_tm, ((0, 0), (0, Bp - B), (0, 0)))           # [T, Bp, I]
    x_flat = x_p.reshape(T * Bp, I).astype(mxu_dtype)

    GATE_ORDER = (0, 1, 3, 2)   # PyTorch (i, f, g, o) -> kernel (i, f, o, g)

    def pad_gate_cols(w_t):     # [rows, 4H] -> [rows, 4*HP], gates reordered
        rows = w_t.shape[0]
        w4 = w_t.reshape(rows, 4, H)[:, GATE_ORDER, :]
        return jnp.pad(w4, ((0, 0), (0, 0), (0, HP - H))).reshape(rows, 4 * HP)

    wih_p = pad_gate_cols(jnp.asarray(w_ih, jnp.float32).T).astype(mxu_dtype)  # [I, 4HP]
    whh_p = jnp.pad(pad_gate_cols(jnp.asarray(w_hh, jnp.float32).T),
                    ((0, HP - H), (0, 0))).astype(mxu_dtype)                   # [HP, 4HP]
    b_p = pad_gate_cols((jnp.asarray(b_ih, jnp.float32)
                         + jnp.asarray(b_hh, jnp.float32))[None, :])           # [1, 4HP] f32
    wo_p = jnp.pad(jnp.asarray(w_lin, jnp.float32).T,
                   ((0, HP - H), (0, 0)))                                      # [HP, A] f32
    bo = jnp.asarray(b_lin, jnp.float32)[None, :]                              # [1, A]  f32

    # Explicit VMEM budget: resident inputs + f32 gate slab + headroom.
    resident = int(x_flat.size * 2 + T * Bp * 4 * HP * 4
                   + wih_p.size * 2 + whh_p.size * 2 + b_p.size * 4
                   + wo_p.size * 4 + bo.size * 4 + Bp * A * 4)
    vmem_limit = int(min(64 << 20, max(32 << 20, 2 * resident + (4 << 20))))

    vmem = pl.BlockSpec(memory_space=pltpu.MemorySpace.VMEM)
    return pl.pallas_call(
        _lstm_head_kernel,
        out_shape=jax.ShapeDtypeStruct((B, A), jnp.float32),
        in_specs=[vmem] * 6,
        out_specs=vmem,
        scratch_shapes=[pltpu.VMEM((T, Bp, 4 * HP), jnp.float32)],
        compiler_params=pltpu.CompilerParams(vmem_limit_bytes=vmem_limit),
    )(x_flat, wih_p, whh_p, b_p, wo_p, bo)


def init_params(key, input_size, hidden_size, num_assets):
    """Deterministic init mimicking PyTorch's U(-1/sqrt(H), 1/sqrt(H))."""
    k = 1.0 / jnp.sqrt(jnp.float32(hidden_size))
    keys = jax.random.split(key, 6)
    u = lambda kk, shape: jax.random.uniform(kk, shape, jnp.float32, -k, k)
    w_ih = u(keys[0], (4 * hidden_size, input_size))
    w_hh = u(keys[1], (4 * hidden_size, hidden_size))
    b_ih = u(keys[2], (4 * hidden_size,))
    b_hh = u(keys[3], (4 * hidden_size,))
    w_lin = u(keys[4], (num_assets, hidden_size))
    b_lin = u(keys[5], (num_assets,))
    return (w_ih, w_hh, b_ih, b_hh, w_lin, b_lin)


def _reference_forward(x, params):
    """Pure-JAX f32 reference matching the PyTorch module semantics."""
    w_ih, w_hh, b_ih, b_hh, w_lin, b_lin = [jnp.asarray(p, jnp.float32)
                                            for p in params]
    B, T, _ = x.shape
    H = w_hh.shape[1]
    h = jnp.zeros((B, H), jnp.float32)
    c = jnp.zeros((B, H), jnp.float32)
    b = b_ih + b_hh
    for t in range(T):
        g = x[:, t, :] @ w_ih.T + h @ w_hh.T + b
        i_g = jax.nn.sigmoid(g[:, 0 * H:1 * H])
        f_g = jax.nn.sigmoid(g[:, 1 * H:2 * H])
        g_g = jnp.tanh(g[:, 2 * H:3 * H])
        o_g = jax.nn.sigmoid(g[:, 3 * H:4 * H])
        c = f_g * c + i_g * g_g
        h = o_g * jnp.tanh(c)
    logits = h @ w_lin.T + b_lin
    return jax.nn.softmax(logits, axis=1)


if __name__ == "__main__":
    B, T, I = 2, 8, 16          # batch, seq_len, input_size
    H, A = 64, 4                # module defaults: hidden_size=64, num_assets=4

    key = jax.random.PRNGKey(0)
    k_x, k_p = jax.random.split(key)
    x = jax.random.normal(k_x, (B, T, I), jnp.float32)
    params = init_params(k_p, I, H, A)

    weights = jax.block_until_ready(portfolio_lstm_forward(x, params))
    assert weights.shape == (B, A)
    # Exact softmax normalization -> rows sum to 1 tightly.
    assert jnp.allclose(jnp.sum(weights, axis=1), 1.0, atol=1e-5)
    # Match the f32 pure-JAX reference (bf16 MXU operands in the LSTM).
    ref = _reference_forward(x, params)
    assert jnp.allclose(weights, ref, atol=5e-2)
    print("KERNEL_OK")
</pallas_src>

<mosaic_0001>
module attributes {stable_mosaic.version = 11 : i64} {
  func.func @_lstm_head_kernel(%arg0: memref<64x16xbf16, #tpu.memory_space<vmem>>, %arg1: memref<16x512xbf16, #tpu.memory_space<vmem>>, %arg2: memref<128x512xbf16, #tpu.memory_space<vmem>>, %arg3: memref<1x512xf32, #tpu.memory_space<vmem>>, %arg4: memref<128x4xf32, #tpu.memory_space<vmem>>, %arg5: memref<1x4xf32, #tpu.memory_space<vmem>>, %arg6: memref<2x4xf32, #tpu.memory_space<vmem>>, %arg7: memref<8x8x512xf32, #tpu.memory_space<vmem>>) attributes {dimension_semantics = [], scalar_prefetch = 0 : i64, scratch_operands = 1 : i64, tpu.core_type = #tpu.core_type<tc>} {
    %c0 = arith.constant 0 : index
    %c0_0 = arith.constant 0 : index
    %0 = vector.load %arg0[%c0, %c0_0] : memref<64x16xbf16, #tpu.memory_space<vmem>>, vector<64x16xbf16>
    %c0_1 = arith.constant 0 : index
    %c0_2 = arith.constant 0 : index
    %1 = vector.load %arg1[%c0_1, %c0_2] : memref<16x512xbf16, #tpu.memory_space<vmem>>, vector<16x512xbf16>
    %cst = arith.constant dense<0.000000e+00> : vector<64x512xf32>
    %2 = tpu.matmul %0, %1, %cst {dimension_numbers = #tpu.dot_dimension_numbers<[1], [0], [0], [1], [0, 0, 1, 1], [], []>} : vector<64x16xbf16>, vector<16x512xbf16>, vector<64x512xf32> -> vector<64x512xf32>
    %c0_3 = arith.constant 0 : index
    %c0_4 = arith.constant 0 : index
    %3 = vector.load %arg3[%c0_3, %c0_4] : memref<1x512xf32, #tpu.memory_space<vmem>>, vector<1x512xf32>
    %4 = vector.broadcast %3 : vector<1x512xf32> to vector<64x512xf32>
    %5 = arith.addf %2, %4 : vector<64x512xf32>
    %6 = vector.shape_cast %5 : vector<64x512xf32> to vector<8x8x512xf32>
    %c0_5 = arith.constant 0 : index
    %c0_6 = arith.constant 0 : index
    %c0_7 = arith.constant 0 : index
    %7 = vector.load %arg7[%c0_5, %c0_6, %c0_7] : memref<8x8x512xf32, #tpu.memory_space<vmem>>, vector<8x8x512xf32>
    tpu.vector_store %arg7[%c0_5, %c0_6, %c0_7], %6 {strides = array<i32>} : memref<8x8x512xf32, #tpu.memory_space<vmem>>, vector<8x8x512xf32>,
    %c0_8 = arith.constant 0 : index
    %c0_9 = arith.constant 0 : index
    %8 = vector.load %arg2[%c0_8, %c0_9] : memref<128x512xbf16, #tpu.memory_space<vmem>>, vector<128x512xbf16>
    %cst_10 = arith.constant 0.000000e+00 : f32
    %9 = vector.broadcast %cst_10 : f32 to vector<8x128xf32>
    %cst_11 = arith.constant 0.000000e+00 : f32
    %10 = vector.broadcast %cst_11 : f32 to vector<8x128xf32>
    %c0_i32 = arith.constant 0 : i32
    %11 = arith.index_cast %c0_i32 : i32 to index
    %c0_12 = arith.constant 0 : index
    %c0_13 = arith.constant 0 : index
    %12 = vector.load %arg7[%11, %c0_12, %c0_13] : memref<8x8x512xf32, #tpu.memory_space<vmem>>, vector<1x8x512xf32>
    %13 = vector.shape_cast %12 : vector<1x8x512xf32> to vector<8x512xf32>
    %14 = arith.truncf %9 : vector<8x128xf32> to vector<8x128xbf16>
    %cst_14 = arith.constant dense<0.000000e+00> : vector<8x512xf32>
    %15 = tpu.matmul %14, %8, %cst_14 {dimension_numbers = #tpu.dot_dimension_numbers<[1], [0], [0], [1], [0, 0, 1, 1], [], []>} : vector<8x128xbf16>, vector<128x512xbf16>, vector<8x512xf32> -> vector<8x512xf32>
    %16 = arith.addf %13, %15 : vector<8x512xf32>
    %17 = vector.extract_strided_slice %16 {offsets = [0, 0], sizes = [8, 384], strides = [1, 1]} : vector<8x512xf32> to vector<8x384xf32>
    %18 = arith.negf %17 : vector<8x384xf32>
    %19 = math.exp %18 : vector<8x384xf32>
    %cst_15 = arith.constant 1.000000e+00 : f32
    %20 = vector.broadcast %cst_15 : f32 to vector<8x384xf32>
    %21 = arith.addf %20, %19 : vector<8x384xf32>
    %22 = arith.divf %20, %21 : vector<8x384xf32>
    %23 = vector.extract_strided_slice %22 {offsets = [0, 0], sizes = [8, 128], strides = [1, 1]} : vector<8x384xf32> to vector<8x128xf32>
    %24 = vector.extract_strided_slice %22 {offsets = [0, 128], sizes = [8, 128], strides = [1, 1]} : vector<8x384xf32> to vector<8x128xf32>
    %25 = vector.extract_strided_slice %22 {offsets = [0, 256], sizes = [8, 128], strides = [1, 1]} : vector<8x384xf32> to vector<8x128xf32>
    %26 = vector.extract_strided_slice %16 {offsets = [0, 384], sizes = [8, 128], strides = [1, 1]} : vector<8x512xf32> to vector<8x128xf32>
    %27 = math.tanh %26 : vector<8x128xf32>
    %28 = arith.mulf %24, %10 : vector<8x128xf32>
    %29 = arith.mulf %23, %27 : vector<8x128xf32>
    %30 = arith.addf %28, %29 : vector<8x128xf32>
    %31 = math.tanh %30 : vector<8x128xf32>
    %32 = arith.mulf %25, %31 : vector<8x128xf32>
    %c1_i32 = arith.constant 1 : i32
    %33 = arith.index_cast %c1_i32 : i32 to index
    %c0_16 = arith.constant 0 : index
    %c0_17 = arith.constant 0 : index
    %34 = vector.load %arg7[%33, %c0_16, %c0_17] : memref<8x8x512xf32, #tpu.memory_space<vmem>>, vector<1x8x512xf32>
    %35 = vector.shape_cast %34 : vector<1x8x512xf32> to vector<8x512xf32>
    %36 = arith.truncf %32 : vector<8x128xf32> to vector<8x128xbf16>
    %cst_18 = arith.constant dense<0.000000e+00> : vector<8x512xf32>
    %37 = tpu.matmul %36, %8, %cst_18 {dimension_numbers = #tpu.dot_dimension_numbers<[1], [0], [0], [1], [0, 0, 1, 1], [], []>} : vector<8x128xbf16>, vector<128x512xbf16>, vector<8x512xf32> -> vector<8x512xf32>
    %38 = arith.addf %35, %37 : vector<8x512xf32>
    %39 = vector.extract_strided_slice %38 {offsets = [0, 0], sizes = [8, 384], strides = [1, 1]} : vector<8x512xf32> to vector<8x384xf32>
    %40 = arith.negf %39 : vector<8x384xf32>
    %41 = math.exp %40 : vector<8x384xf32>
    %cst_19 = arith.constant 1.000000e+00 : f32
    %42 = vector.broadcast %cst_19 : f32 to vector<8x384xf32>
    %43 = arith.addf %42, %41 : vector<8x384xf32>
    %44 = arith.divf %42, %43 : vector<8x384xf32>
    %45 = vector.extract_strided_slice %44 {offsets = [0, 0], sizes = [8, 128], strides = [1, 1]} : vector<8x384xf32> to vector<8x128xf32>
    %46 = vector.extract_strided_slice %44 {offsets = [0, 128], sizes = [8, 128], strides = [1, 1]} : vector<8x384xf32> to vector<8x128xf32>
    %47 = vector.extract_strided_slice %44 {offsets = [0, 256], sizes = [8, 128], strides = [1, 1]} : vector<8x384xf32> to vector<8x128xf32>
    %48 = vector.extract_strided_slice %38 {offsets = [0, 384], sizes = [8, 128], strides = [1, 1]} : vector<8x512xf32> to vector<8x128xf32>
    %49 = math.tanh %48 : vector<8x128xf32>
    %50 = arith.mulf %46, %30 : vector<8x128xf32>
    %51 = arith.mulf %45, %49 : vector<8x128xf32>
    %52 = arith.addf %50, %51 : vector<8x128xf32>
    %53 = math.tanh %52 : vector<8x128xf32>
    %54 = arith.mulf %47, %53 : vector<8x128xf32>
    %c2_i32 = arith.constant 2 : i32
    %55 = arith.index_cast %c2_i32 : i32 to index
    %c0_20 = arith.constant 0 : index
    %c0_21 = arith.constant 0 : index
    %56 = vector.load %arg7[%55, %c0_20, %c0_21] : memref<8x8x512xf32, #tpu.memory_space<vmem>>, vector<1x8x512xf32>
    %57 = vector.shape_cast %56 : vector<1x8x512xf32> to vector<8x512xf32>
    %58 = arith.truncf %54 : vector<8x128xf32> to vector<8x128xbf16>
    %cst_22 = arith.constant dense<0.000000e+00> : vector<8x512xf32>
    %59 = tpu.matmul %58, %8, %cst_22 {dimension_numbers = #tpu.dot_dimension_numbers<[1], [0], [0], [1], [0, 0, 1, 1], [], []>} : vector<8x128xbf16>, vector<128x512xbf16>, vector<8x512xf32> -> vector<8x512xf32>
    %60 = arith.addf %57, %59 : vector<8x512xf32>
    %61 = vector.extract_strided_slice %60 {offsets = [0, 0], sizes = [8, 384], strides = [1, 1]} : vector<8x512xf32> to vector<8x384xf32>
    %62 = arith.negf %61 : vector<8x384xf32>
    %63 = math.exp %62 : vector<8x384xf32>
    %cst_23 = arith.constant 1.000000e+00 : f32
    %64 = vector.broadcast %cst_23 : f32 to vector<8x384xf32>
    %65 = arith.addf %64, %63 : vector<8x384xf32>
    %66 = arith.divf %64, %65 : vector<8x384xf32>
    %67 = vector.extract_strided_slice %66 {offsets = [0, 0], sizes = [8, 128], strides = [1, 1]} : vector<8x384xf32> to vector<8x128xf32>
    %68 = vector.extract_strided_slice %66 {offsets = [0, 128], sizes = [8, 128], strides = [1, 1]} : vector<8x384xf32> to vector<8x128xf32>
    %69 = vector.extract_strided_slice %66 {offsets = [0, 256], sizes = [8, 128], strides = [1, 1]} : vector<8x384xf32> to vector<8x128xf32>
    %70 = vector.extract_strided_slice %60 {offsets = [0, 384], sizes = [8, 128], strides = [1, 1]} : vector<8x512xf32> to vector<8x128xf32>
    %71 = math.tanh %70 : vector<8x128xf32>
    %72 = arith.mulf %68, %52 : vector<8x128xf32>
    %73 = arith.mulf %67, %71 : vector<8x128xf32>
    %74 = arith.addf %72, %73 : vector<8x128xf32>
    %75 = math.tanh %74 : vector<8x128xf32>
    %76 = arith.mulf %69, %75 : vector<8x128xf32>
    %c3_i32 = arith.constant 3 : i32
    %77 = arith.index_cast %c3_i32 : i32 to index
    %c0_24 = arith.constant 0 : index
    %c0_25 = arith.constant 0 : index
    %78 = vector.load %arg7[%77, %c0_24, %c0_25] : memref<8x8x512xf32, #tpu.memory_space<vmem>>, vector<1x8x512xf32>
    %79 = vector.shape_cast %78 : vector<1x8x512xf32> to vector<8x512xf32>
    %80 = arith.truncf %76 : vector<8x128xf32> to vector<8x128xbf16>
    %cst_26 = arith.constant dense<0.000000e+00> : vector<8x512xf32>
    %81 = tpu.matmul %80, %8, %cst_26 {dimension_numbers = #tpu.dot_dimension_numbers<[1], [0], [0], [1], [0, 0, 1, 1], [], []>} : vector<8x128xbf16>, vector<128x512xbf16>, vector<8x512xf32> -> vector<8x512xf32>
    %82 = arith.addf %79, %81 : vector<8x512xf32>
    %83 = vector.extract_strided_slice %82 {offsets = [0, 0], sizes = [8, 384], strides = [1, 1]} : vector<8x512xf32> to vector<8x384xf32>
    %84 = arith.negf %83 : vector<8x384xf32>
    %85 = math.exp %84 : vector<8x384xf32>
    %cst_27 = arith.constant 1.000000e+00 : f32
    %86 = vector.broadcast %cst_27 : f32 to vector<8x384xf32>
    %87 = arith.addf %86, %85 : vector<8x384xf32>
    %88 = arith.divf %86, %87 : vector<8x384xf32>
    %89 = vector.extract_strided_slice %88 {offsets = [0, 0], sizes = [8, 128], strides = [1, 1]} : vector<8x384xf32> to vector<8x128xf32>
    %90 = vector.extract_strided_slice %88 {offsets = [0, 128], sizes = [8, 128], strides = [1, 1]} : vector<8x384xf32> to vector<8x128xf32>
    %91 = vector.extract_strided_slice %88 {offsets = [0, 256], sizes = [8, 128], strides = [1, 1]} : vector<8x384xf32> to vector<8x128xf32>
    %92 = vector.extract_strided_slice %82 {offsets = [0, 384], sizes = [8, 128], strides = [1, 1]} : vector<8x512xf32> to vector<8x128xf32>
    %93 = math.tanh %92 : vector<8x128xf32>
    %94 = arith.mulf %90, %74 : vector<8x128xf32>
    %95 = arith.mulf %89, %93 : vector<8x128xf32>
    %96 = arith.addf %94, %95 : vector<8x128xf32>
    %97 = math.tanh %96 : vector<8x128xf32>
    %98 = arith.mulf %91, %97 : vector<8x128xf32>
    %c4_i32 = arith.constant 4 : i32
    %99 = arith.index_cast %c4_i32 : i32 to index
    %c0_28 = arith.constant 0 : index
    %c0_29 = arith.constant 0 : index
    %100 = vector.load %arg7[%99, %c0_28, %c0_29] : memref<8x8x512xf32, #tpu.memory_space<vmem>>, vector<1x8x512xf32>
    %101 = vector.shape_cast %100 : vector<1x8x512xf32> to vector<8x512xf32>
    %102 = arith.truncf %98 : vector<8x128xf32> to vector<8x128xbf16>
    %cst_30 = arith.constant dense<0.000000e+00> : vector<8x512xf32>
    %103 = tpu.matmul %102, %8, %cst_30 {dimension_numbers = #tpu.dot_dimension_numbers<[1], [0], [0], [1], [0, 0, 1, 1], [], []>} : vector<8x128xbf16>, vector<128x512xbf16>, vector<8x512xf32> -> vector<8x512xf32>
    %104 = arith.addf %101, %103 : vector<8x512xf32>
    %105 = vector.extract_strided_slice %104 {offsets = [0, 0], sizes = [8, 384], strides = [1, 1]} : vector<8x512xf32> to vector<8x384xf32>
    %106 = arith.negf %105 : vector<8x384xf32>
    %107 = math.exp %106 : vector<8x384xf32>
    %cst_31 = arith.constant 1.000000e+00 : f32
    %108 = vector.broadcast %cst_31 : f32 to vector<8x384xf32>
    %109 = arith.addf %108, %107 : vector<8x384xf32>
    %110 = arith.divf %108, %109 : vector<8x384xf32>
    %111 = vector.extract_strided_slice %110 {offsets = [0, 0], sizes = [8, 128], strides = [1, 1]} : vector<8x384xf32> to vector<8x128xf32>
    %112 = vector.extract_strided_slice %110 {offsets = [0, 128], sizes = [8, 128], strides = [1, 1]} : vector<8x384xf32> to vector<8x128xf32>
    %113 = vector.extract_strided_slice %110 {offsets = [0, 256], sizes = [8, 128], strides = [1, 1]} : vector<8x384xf32> to vector<8x128xf32>
    %114 = vector.extract_strided_slice %104 {offsets = [0, 384], sizes = [8, 128], strides = [1, 1]} : vector<8x512xf32> to vector<8x128xf32>
    %115 = math.tanh %114 : vector<8x128xf32>
    %116 = arith.mulf %112, %96 : vector<8x128xf32>
    %117 = arith.mulf %111, %115 : vector<8x128xf32>
    %118 = arith.addf %116, %117 : vector<8x128xf32>
    %119 = math.tanh %118 : vector<8x128xf32>
    %120 = arith.mulf %113, %119 : vector<8x128xf32>
    %c5_i32 = arith.constant 5 : i32
    %121 = arith.index_cast %c5_i32 : i32 to index
    %c0_32 = arith.constant 0 : index
    %c0_33 = arith.constant 0 : index
    %122 = vector.load %arg7[%121, %c0_32, %c0_33] : memref<8x8x512xf32, #tpu.memory_space<vmem>>, vector<1x8x512xf32>
    %123 = vector.shape_cast %122 : vector<1x8x512xf32> to vector<8x512xf32>
    %124 = arith.truncf %120 : vector<8x128xf32> to vector<8x128xbf16>
    %cst_34 = arith.constant dense<0.000000e+00> : vector<8x512xf32>
    %125 = tpu.matmul %124, %8, %cst_34 {dimension_numbers = #tpu.dot_dimension_numbers<[1], [0], [0], [1], [0, 0, 1, 1], [], []>} : vector<8x128xbf16>, vector<128x512xbf16>, vector<8x512xf32> -> vector<8x512xf32>
    %126 = arith.addf %123, %125 : vector<8x512xf32>
    %127 = vector.extract_strided_slice %126 {offsets = [0, 0], sizes = [8, 384], strides = [1, 1]} : vector<8x512xf32> to vector<8x384xf32>
    %128 = arith.negf %127 : vector<8x384xf32>
    %129 = math.exp %128 : vector<8x384xf32>
    %cst_35 = arith.constant 1.000000e+00 : f32
    %130 = vector.broadcast %cst_35 : f32 to vector<8x384xf32>
    %131 = arith.addf %130, %129 : vector<8x384xf32>
    %132 = arith.divf %130, %131 : vector<8x384xf32>
    %133 = vector.extract_strided_slice %132 {offsets = [0, 0], sizes = [8, 128], strides = [1, 1]} : vector<8x384xf32> to vector<8x128xf32>
    %134 = vector.extract_strided_slice %132 {offsets = [0, 128], sizes = [8, 128], strides = [1, 1]} : vector<8x384xf32> to vector<8x128xf32>
    %135 = vector.extract_strided_slice %132 {offsets = [0, 256], sizes = [8, 128], strides = [1, 1]} : vector<8x384xf32> to vector<8x128xf32>
    %136 = vector.extract_strided_slice %126 {offsets = [0, 384], sizes = [8, 128], strides = [1, 1]} : vector<8x512xf32> to vector<8x128xf32>
    %137 = math.tanh %136 : vector<8x128xf32>
    %138 = arith.mulf %134, %118 : vector<8x128xf32>
    %139 = arith.mulf %133, %137 : vector<8x128xf32>
    %140 = arith.addf %138, %139 : vector<8x128xf32>
    %141 = math.tanh %140 : vector<8x128xf32>
    %142 = arith.mulf %135, %141 : vector<8x128xf32>
    %c6_i32 = arith.constant 6 : i32
    %143 = arith.index_cast %c6_i32 : i32 to index
    %c0_36 = arith.constant 0 : index
    %c0_37 = arith.constant 0 : index
    %144 = vector.load %arg7[%143, %c0_36, %c0_37] : memref<8x8x512xf32, #tpu.memory_space<vmem>>, vector<1x8x512xf32>
    %145 = vector.shape_cast %144 : vector<1x8x512xf32> to vector<8x512xf32>
    %146 = arith.truncf %142 : vector<8x128xf32> to vector<8x128xbf16>
    %cst_38 = arith.constant dense<0.000000e+00> : vector<8x512xf32>
    %147 = tpu.matmul %146, %8, %cst_38 {dimension_numbers = #tpu.dot_dimension_numbers<[1], [0], [0], [1], [0, 0, 1, 1], [], []>} : vector<8x128xbf16>, vector<128x512xbf16>, vector<8x512xf32> -> vector<8x512xf32>
    %148 = arith.addf %145, %147 : vector<8x512xf32>
    %149 = vector.extract_strided_slice %148 {offsets = [0, 0], sizes = [8, 384], strides = [1, 1]} : vector<8x512xf32> to vector<8x384xf32>
    %150 = arith.negf %149 : vector<8x384xf32>
    %151 = math.exp %150 : vector<8x384xf32>
    %cst_39 = arith.constant 1.000000e+00 : f32
    %152 = vector.broadcast %cst_39 : f32 to vector<8x384xf32>
    %153 = arith.addf %152, %151 : vector<8x384xf32>
    %154 = arith.divf %152, %153 : vector<8x384xf32>
    %155 = vector.extract_strided_slice %154 {offsets = [0, 0], sizes = [8, 128], strides = [1, 1]} : vector<8x384xf32> to vector<8x128xf32>
    %156 = vector.extract_strided_slice %154 {offsets = [0, 128], sizes = [8, 128], strides = [1, 1]} : vector<8x384xf32> to vector<8x128xf32>
    %157 = vector.extract_strided_slice %154 {offsets = [0, 256], sizes = [8, 128], strides = [1, 1]} : vector<8x384xf32> to vector<8x128xf32>
    %158 = vector.extract_strided_slice %148 {offsets = [0, 384], sizes = [8, 128], strides = [1, 1]} : vector<8x512xf32> to vector<8x128xf32>
    %159 = math.tanh %158 : vector<8x128xf32>
    %160 = arith.mulf %156, %140 : vector<8x128xf32>
    %161 = arith.mulf %155, %159 : vector<8x128xf32>
    %162 = arith.addf %160, %161 : vector<8x128xf32>
    %163 = math.tanh %162 : vector<8x128xf32>
    %164 = arith.mulf %157, %163 : vector<8x128xf32>
    %c7_i32 = arith.constant 7 : i32
    %165 = arith.index_cast %c7_i32 : i32 to index
    %c0_40 = arith.constant 0 : index
    %c0_41 = arith.constant 0 : index
    %166 = vector.load %arg7[%165, %c0_40, %c0_41] : memref<8x8x512xf32, #tpu.memory_space<vmem>>, vector<1x8x512xf32>
    %167 = vector.shape_cast %166 : vector<1x8x512xf32> to vector<8x512xf32>
    %168 = arith.truncf %164 : vector<8x128xf32> to vector<8x128xbf16>
    %cst_42 = arith.constant dense<0.000000e+00> : vector<8x512xf32>
    %169 = tpu.matmul %168, %8, %cst_42 {dimension_numbers = #tpu.dot_dimension_numbers<[1], [0], [0], [1], [0, 0, 1, 1], [], []>} : vector<8x128xbf16>, vector<128x512xbf16>, vector<8x512xf32> -> vector<8x512xf32>
    %170 = arith.addf %167, %169 : vector<8x512xf32>
    %171 = vector.extract_strided_slice %170 {offsets = [0, 0], sizes = [8, 384], strides = [1, 1]} : vector<8x512xf32> to vector<8x384xf32>
    %172 = arith.negf %171 : vector<8x384xf32>
    %173 = math.exp %172 : vector<8x384xf32>
    %cst_43 = arith.constant 1.000000e+00 : f32
    %174 = vector.broadcast %cst_43 : f32 to vector<8x384xf32>
    %175 = arith.addf %174, %173 : vector<8x384xf32>
    %176 = arith.divf %174, %175 : vector<8x384xf32>
    %177 = vector.extract_strided_slice %176 {offsets = [0, 0], sizes = [8, 128], strides = [1, 1]} : vector<8x384xf32> to vector<8x128xf32>
    %178 = vector.extract_strided_slice %176 {offsets = [0, 128], sizes = [8, 128], strides = [1, 1]} : vector<8x384xf32> to vector<8x128xf32>
    %179 = vector.extract_strided_slice %176 {offsets = [0, 256], sizes = [8, 128], strides = [1, 1]} : vector<8x384xf32> to vector<8x128xf32>
    %180 = vector.extract_strided_slice %170 {offsets = [0, 384], sizes = [8, 128], strides = [1, 1]} : vector<8x512xf32> to vector<8x128xf32>
    %181 = math.tanh %180 : vector<8x128xf32>
    %182 = arith.mulf %178, %162 : vector<8x128xf32>
    %183 = arith.mulf %177, %181 : vector<8x128xf32>
    %184 = arith.addf %182, %183 : vector<8x128xf32>
    %185 = math.tanh %184 : vector<8x128xf32>
    %186 = arith.mulf %179, %185 : vector<8x128xf32>
    %c8_i32 = arith.constant 8 : i32
    %c0_44 = arith.constant 0 : index
    %c0_45 = arith.constant 0 : index
    %187 = vector.load %arg4[%c0_44, %c0_45] : memref<128x4xf32, #tpu.memory_space<vmem>>, vector<128x4xf32>
    %cst_46 = arith.constant dense<0.000000e+00> : vector<8x4xf32>
    %188 = tpu.matmul %186, %187, %cst_46 {dimension_numbers = #tpu.dot_dimension_numbers<[1], [0], [0], [1], [0, 0, 1, 1], [], []>} : vector<8x128xf32>, vector<128x4xf32>, vector<8x4xf32> -> vector<8x4xf32>
    %c0_47 = arith.constant 0 : index
    %c0_48 = arith.constant 0 : index
    %189 = vector.load %arg5[%c0_47, %c0_48] : memref<1x4xf32, #tpu.memory_space<vmem>>, vector<1x4xf32>
    %190 = vector.broadcast %189 : vector<1x4xf32> to vector<8x4xf32>
    %191 = arith.addf %188, %190 : vector<8x4xf32>
    %192 = vector.extract_strided_slice %191 {offsets = [0, 0], sizes = [2, 4], strides = [1, 1]} : vector<8x4xf32> to vector<2x4xf32>
    %cst_49 = arith.constant dense<0xFF800000> : vector<2xf32>
    %193 = vector.multi_reduction <maximumf>, %192, %cst_49 [1] : vector<2x4xf32> to vector<2xf32>
    %194 = vector.shape_cast %193 : vector<2xf32> to vector<2x1xf32>
    %195 = vector.broadcast %194 : vector<2x1xf32> to vector<2x4xf32>
    %196 = arith.subf %192, %195 : vector<2x4xf32>
    %197 = math.exp %196 : vector<2x4xf32>
    %cst_50 = arith.constant dense<0.000000e+00> : vector<2xf32>
    %198 = vector.multi_reduction <add>, %197, %cst_50 [1] : vector<2x4xf32> to vector<2xf32>
    %199 = vector.shape_cast %198 : vector<2xf32> to vector<2x1xf32>
    %200 = vector.broadcast %199 : vector<2x1xf32> to vector<2x4xf32>
    %201 = arith.divf %197, %200 : vector<2x4xf32>
    %c0_51 = arith.constant 0 : index
    %c0_52 = arith.constant 0 : index
    %202 = vector.load %arg6[%c0_51, %c0_52] : memref<2x4xf32, #tpu.memory_space<vmem>>, vector<2x4xf32>
    tpu.vector_store %arg6[%c0_51, %c0_52], %201 {strides = array<i32>} : memref<2x4xf32, #tpu.memory_space<vmem>>, vector<2x4xf32>,
    return
  }
}

</mosaic_0001>

<llo_original>
// kernel: tpu_custom_call.1
$region0: #{tpu_custom_call.1}
  #allocation0 [shape = 'u32[]', space=smem, size = 0x4, offset = 0x4, fixed_abs, tag = 'smem constant byte address 0x4 - core index']
  #allocation1 [shape = 'u32[144,128]{1,0:T(1,128)}', space=vmem, size = 0x12000, scoped, tag = 'internal scratch']
  #allocation2 [shape = 'f32[8,8,512]{2,1,0:T(8,128)}', space=vmem, size = 0x20000, scoped, tag = 'scratch operand']
  %s0 = inlined_call_operand.vmem [shape: bf16[64,16], index: 0, kind: input, shape index: {}]
  %s1 = inlined_call_operand.vmem [shape: bf16[16,512], index: 1, kind: input, shape index: {}]
  %s2 = inlined_call_operand.hbm [shape: bf16[128,512], index: 2, kind: input, shape index: {}]
  %s3 = inlined_call_operand.vmem [shape: f32[1,512], index: 3, kind: input, shape index: {}]
  %s4 = inlined_call_operand.vmem [shape: f32[128,4], index: 4, kind: input, shape index: {}]
  %s5 = inlined_call_operand.vmem [shape: f32[1,4], index: 5, kind: input, shape index: {}]
  %s6 = inlined_call_operand.hbm [shape: f32[2,4], index: 6, kind: output, shape index: {}]
  %s7 = sld [smem:[#allocation0]]
  $region38: #{tpu_custom_call.1} parent=0
    _
  %s9 = ssub.s32 1, %s7
  %s10 = scalar_select 0, %s9, %s7
  $region1: #{tpu_custom_call.1} parent=0
    #allocation3 [shape = 'u8[131072]{0}', space=vmem, size = 0x20000, scoped, tag = 'input window, operand 2, single buffered']
    #allocation4 [shape = 's32[1]{0}', space=sflag, size = 0x4, scoped, tag = 'scoped memory for tpu_custom_call.1']
    #allocation5 [shape = 's32[1]{0}', space=sflag, size = 0x4, scoped, tag = 'scoped memory for tpu_custom_call.1']
    #allocation6 [shape = 'u8[1024]{0}', space=vmem, size = 0x400, scoped, tag = 'output window, operand 0, single buffered']
    %11 = vsyncpa [#allocation4], 0
    %12 = vsyncpa [#allocation5], 0
    // Predicated region
    $region2: #{tpu_custom_call.1} parent=1 // pred_check
      _
    $region3: #{tpu_custom_call.1} parent=1 // pred_check_branch
      %14 = sbr.rel (0) target = $region5
    $region4: #{tpu_custom_call.1} parent=1 // pred_region
      _
    $region5: #{tpu_custom_call.1} parent=1 // pred_fallthru
      _
    // Predicated region
    $region6: #{tpu_custom_call.1} parent=1 // pred_check
      _
    $region7: #{tpu_custom_call.1} parent=1 // pred_check_branch
      %16 = sbr.rel (0) target = $region9
    $region8: #{tpu_custom_call.1} parent=1 // pred_region
      _
    $region9: #{tpu_custom_call.1} parent=1 // pred_fallthru
      _
    // Predicated region
    $region10: #{tpu_custom_call.1} parent=1 // pred_check
      _
    $region11: #{tpu_custom_call.1} parent=1 // pred_check_branch
      %18 = sbr.rel (0) target = $region13
    $region12: #{tpu_custom_call.1} parent=1 // pred_region
      %s20 = ssub.s32 4096, 4096
      %21 = vsyncadd [#allocation4], %s20
      %s22 = sshll.u32 [#allocation3], 4
      %s23 = int_to_ptr.vmem [resolvable:$true] %s22
      %28 = dma.hbm_to_vmem [thread:$0]  %s2, 4096, %s23, [#allocation4], 256, 256, 16
    $region13: #{tpu_custom_call.1} parent=1 // pred_fallthru
      _
    // Predicated region
    $region14: #{tpu_custom_call.1} parent=1 // pred_check
      _
    $region15: #{tpu_custom_call.1} parent=1 // pred_check_branch
      %30 = sbr.rel (0) target = $region17
    $region16: #{tpu_custom_call.1} parent=1 // pred_region
      _
    $region17: #{tpu_custom_call.1} parent=1 // pred_fallthru
      _
    // Predicated region
    $region18: #{tpu_custom_call.1} parent=1 // pred_check
      _
    $region19: #{tpu_custom_call.1} parent=1 // pred_check_branch
      %32 = sbr.rel (0) target = $region21
    $region20: #{tpu_custom_call.1} parent=1 // pred_region
      _
    $region21: #{tpu_custom_call.1} parent=1 // pred_fallthru
      _
    // Predicated region
    $region22: #{tpu_custom_call.1} parent=1 // pred_check
      _
    $region23: #{tpu_custom_call.1} parent=1 // pred_check_branch
      %34 = sbr.rel (0) target = $region25
    $region24: #{tpu_custom_call.1} parent=1 // pred_region
      _
    $region25: #{tpu_custom_call.1} parent=1 // pred_fallthru
      _
    // Predicated region
    $region26: #{tpu_custom_call.1} parent=1 // pred_check
      _
    $region27: #{tpu_custom_call.1} parent=1 // pred_check_branch
      %36 = sbr.rel (0) target = $region29
    $region28: #{tpu_custom_call.1} parent=1 // pred_region
      %37 = dma.done [#allocation4], 4096
    $region29: #{tpu_custom_call.1} parent=1 // pred_fallthru
      _
    %v39 = vld [vmem:[%s0] sm:$0xf]
    %v40 = vld [vmem:[%s0 + $0x4] sm:$0xf]
    %v41 = vld [vmem:[%s0 + $0x8] sm:$0xf]
    %v42 = vld [vmem:[%s0 + $0xc] sm:$0xf]
    %v43 = vld [vmem:[%s0 + $0x10] sm:$0xf]
    %v44 = vld [vmem:[%s0 + $0x14] sm:$0xf]
    %v45 = vld [vmem:[%s0 + $0x18] sm:$0xf]
    %v46 = vld [vmem:[%s0 + $0x1c] sm:$0xf]
    %v47 = vld [vmem:[%s1] sm:$0xff]
    %v48 = vld [vmem:[%s1 + $0x8] sm:$0xff]
    %v49 = vld [vmem:[%s1 + $0x10] sm:$0xff]
    %v50 = vld [vmem:[%s1 + $0x18] sm:$0xff]
    %v51 = vld [vmem:[%s3] sm:$0xf]
    %v53 = vlaneseq
    %v54 = vshrl.u32 %v53, 7
    %v55 = vsub.s32 0, %v54
    %v56 = vrot.slane %v51, %v55
    %v57 = vlaneseq
    %v58 = vshrl.u32 %v57, 7
    %v59 = vsub.s32 1, %v58
    %v60 = vrot.slane %v51, %v59
    %v61 = vlaneseq
    %v62 = vshrl.u32 %v61, 7
    %v63 = vsub.s32 2, %v62
    %v64 = vrot.slane %v51, %v63
    %v65 = vlaneseq
    %v66 = vshrl.u32 %v65, 7
    %v67 = vsub.s32 3, %v66
    %v68 = vrot.slane %v51, %v67
    %v81 = vunpack.c.l.b16 %v39
    %v82 = vunpack.c.l.b16 %v40
    %v83 = vunpack.c.l.b16 %v41
    %v84 = vunpack.c.l.b16 %v42
    %v85 = vunpack.c.l.b16 %v43
    %v86 = vunpack.c.l.b16 %v44
    %v87 = vunpack.c.l.b16 %v45
    %v88 = vunpack.c.l.b16 %v46
    %v89 = vpack.c.b16 %v82, %v81
    %v90 = vpack.c.b16 %v84, %v83
    %v91 = vpack.c.b16 %v86, %v85
    %v92 = vpack.c.b16 %v88, %v87
    %v97 = vunpack.c.l.b16 %v47
    %v98 = vunpack.c.h.b16 %v47
    %v99 = vunpack.c.l.b16 %v48
    %v100 = vunpack.c.h.b16 %v48
    %v101 = vunpack.c.l.b16 %v49
    %v102 = vunpack.c.h.b16 %v49
    %v103 = vunpack.c.l.b16 %v50
    %v104 = vunpack.c.h.b16 %v50
    %v105 = vpack.c.b16 %v101, %v97
    %v106 = vpack.c.b16 %v102, %v98
    %v107 = vpack.c.b16 %v103, %v99
    %v108 = vpack.c.b16 %v104, %v100
    %vm113 = vcmask 130048
    %v115 = vsel %vm113, %v89, 0
    %v118 = vsel %vm113, %v90, 0
    %v121 = vsel %vm113, %v91, 0
    %v124 = vsel %vm113, %v92, 0
    %126 = vmatprep.subr.bf16.mxu0 %v106
    %127 = vmatpush1.bf16.msra.mxu0 %v105
    %128 = vmatprep.subr.bf16.mxu0 0
    %129 = vmatpush1.bf16.msra.mxu0 0
    %130 = vmatprep.subr.bf16.mxu0 0
    %131 = vmatpush1.bf16.msra.mxu0 0
    %132 = vmatprep.subr.bf16.mxu0 0
    %133 = vmatpush1.bf16.msra.mxu0 0
    %134 = vmatprep.subr.bf16.mxu0 0
    %135 = vmatpush1.bf16.msra.mxu0 0
    %136 = vmatprep.subr.bf16.mxu0 0
    %137 = vmatpush1.bf16.msra.mxu0 0
    %138 = vmatprep.subr.bf16.mxu0 0
    %139 = vmatpush1.bf16.msra.mxu0 0
    %140 = vmatprep.subr.bf16.mxu0 0
    %141 = vmatpush1.bf16.msra.mxu0 0
    %142 = vmatprep.subr.bf16.mxu0 0
    %143 = vmatpush1.bf16.msra.mxu0 0
    %144 = vmatprep.subr.bf16.mxu0 0
    %145 = vmatpush1.bf16.msra.mxu0 0
    %146 = vmatprep.subr.bf16.mxu0 0
    %147 = vmatpush1.bf16.msra.mxu0 0
    %148 = vmatprep.subr.bf16.mxu0 0
    %149 = vmatpush1.bf16.msra.mxu0 0
    %150 = vmatprep.subr.bf16.mxu0 0
    %151 = vmatpush1.bf16.msra.mxu0 0
    %152 = vmatprep.subr.bf16.mxu0 0
    %153 = vmatpush1.bf16.msra.mxu0 0
    %154 = vmatprep.subr.bf16.mxu0 0
    %155 = vmatpush1.bf16.msra.mxu0 0
    %156 = vmatprep.subr.bf16.mxu0 0
    %157 = vmatpush1.bf16.msra.mxu0 0
    %158 = vmatprep.mubr.bf16.mxu0 0
    %159 = vmatmul.mubr.bf16.gmra.mrb[0].mxu0 %v115
    %v160 = vpop.f32.mrb[0].mxu0
    %v161 = vadd.f32 %v56, %v160
    %v162 = vpop.f32.mrb[0].mxu0
    %v163 = vadd.f32 %v60, %v162
    %v164 = vpop.f32.mrb[0].mxu0
    %v165 = vadd.f32 %v56, %v164
    %v166 = vpop.f32.mrb[0].mxu0
    %v167 = vadd.f32 %v60, %v166
    %168 = vmatprep.mubr.bf16.mxu0 0
    %169 = vmatmul.mubr.bf16.gmra.mrb[0].mxu0 %v118
    %v170 = vpop.f32.mrb[0].mxu0
    %v171 = vadd.f32 %v56, %v170
    %v172 = vpop.f32.mrb[0].mxu0
    %v173 = vadd.f32 %v60, %v172
    %v174 = vpop.f32.mrb[0].mxu0
    %v175 = vadd.f32 %v56, %v174
    %v176 = vpop.f32.mrb[0].mxu0
    %v177 = vadd.f32 %v60, %v176
    %178 = vmatprep.mubr.bf16.mxu0 0
    %179 = vmatmul.mubr.bf16.gmra.mrb[0].mxu0 %v121
    %v180 = vpop.f32.mrb[0].mxu0
    %v181 = vadd.f32 %v56, %v180
    %v182 = vpop.f32.mrb[0].mxu0
    %v183 = vadd.f32 %v60, %v182
    %v184 = vpop.f32.mrb[0].mxu0
    %v185 = vadd.f32 %v56, %v184
    %v186 = vpop.f32.mrb[0].mxu0
    %v187 = vadd.f32 %v60, %v186
    %188 = vmatprep.mubr.bf16.mxu0 0
    %189 = vmatmul.mubr.bf16.gmra.mrb[0].mxu0 %v124
    %v190 = vpop.f32.mrb[0].mxu0
    %v191 = vadd.f32 %v56, %v190
    %v192 = vpop.f32.mrb[0].mxu0
    %v193 = vadd.f32 %v60, %v192
    %v194 = vpop.f32.mrb[0].mxu0
    %v195 = vadd.f32 %v56, %v194
    %v196 = vpop.f32.mrb[0].mxu0
    %v197 = vadd.f32 %v60, %v196
    %198 = vdwg.mxu0
    %199 = vmatprep.subr.bf16.mxu0 %v108
    %200 = vmatpush1.bf16.msra.mxu0 %v107
    %201 = vmatprep.subr.bf16.mxu0 0
    %202 = vmatpush1.bf16.msra.mxu0 0
    %203 = vmatprep.subr.bf16.mxu0 0
    %204 = vmatpush1.bf16.msra.mxu0 0
    %205 = vmatprep.subr.bf16.mxu0 0
    %206 = vmatpush1.bf16.msra.mxu0 0
    %207 = vmatprep.subr.bf16.mxu0 0
    %208 = vmatpush1.bf16.msra.mxu0 0
    %209 = vmatprep.subr.bf16.mxu0 0
    %210 = vmatpush1.bf16.msra.mxu0 0
    %211 = vmatprep.subr.bf16.mxu0 0
    %212 = vmatpush1.bf16.msra.mxu0 0
    %213 = vmatprep.subr.bf16.mxu0 0
    %214 = vmatpush1.bf16.msra.mxu0 0
    %215 = vmatprep.subr.bf16.mxu0 0
    %216 = vmatpush1.bf16.msra.mxu0 0
    %217 = vmatprep.subr.bf16.mxu0 0
    %218 = vmatpush1.bf16.msra.mxu0 0
    %219 = vmatprep.subr.bf16.mxu0 0
    %220 = vmatpush1.bf16.msra.mxu0 0
    %221 = vmatprep.subr.bf16.mxu0 0
    %222 = vmatpush1.bf16.msra.mxu0 0
    %223 = vmatprep.subr.bf16.mxu0 0
    %224 = vmatpush1.bf16.msra.mxu0 0
    %225 = vmatprep.subr.bf16.mxu0 0
    %226 = vmatpush1.bf16.msra.mxu0 0
    %227 = vmatprep.subr.bf16.mxu0 0
    %228 = vmatpush1.bf16.msra.mxu0 0
    %229 = vmatprep.subr.bf16.mxu0 0
    %230 = vmatpush1.bf16.msra.mxu0 0
    %231 = vmatprep.mubr.bf16.mxu0 0
    %232 = vmatmul.mubr.bf16.gmra.mrb[0].mxu0 %v115
    %v233 = vpop.f32.mrb[0].mxu0
    %v234 = vadd.f32 %v64, %v233
    %v235 = vpop.f32.mrb[0].mxu0
    %v236 = vadd.f32 %v68, %v235
    %v237 = vpop.f32.mrb[0].mxu0
    %v238 = vadd.f32 %v64, %v237
    %v239 = vpop.f32.mrb[0].mxu0
    %v240 = vadd.f32 %v68, %v239
    %241 = vmatprep.mubr.bf16.mxu0 0
    %242 = vmatmul.mubr.bf16.gmra.mrb[0].mxu0 %v118
    %v243 = vpop.f32.mrb[0].mxu0
    %v244 = vadd.f32 %v64, %v243
    %v245 = vpop.f32.mrb[0].mxu0
    %v246 = vadd.f32 %v68, %v245
    %v247 = vpop.f32.mrb[0].mxu0
    %v248 = vadd.f32 %v64, %v247
    %v249 = vpop.f32.mrb[0].mxu0
    %v250 = vadd.f32 %v68, %v249
    %251 = vmatprep.mubr.bf16.mxu0 0
    %252 = vmatmul.mubr.bf16.gmra.mrb[0].mxu0 %v121
    %v253 = vpop.f32.mrb[0].mxu0
    %v254 = vadd.f32 %v64, %v253
    %v255 = vpop.f32.mrb[0].mxu0
    %v256 = vadd.f32 %v68, %v255
    %v257 = vpop.f32.mrb[0].mxu0
    %v258 = vadd.f32 %v64, %v257
    %v259 = vpop.f32.mrb[0].mxu0
    %v260 = vadd.f32 %v68, %v259
    %261 = vmatprep.mubr.bf16.mxu0 0
    %262 = vmatmul.mubr.bf16.gmra.mrb[0].mxu0 %v124
    %v263 = vpop.f32.mrb[0].mxu0
    %v264 = vadd.f32 %v64, %v263
    %v265 = vpop.f32.mrb[0].mxu0
    %v266 = vadd.f32 %v68, %v265
    %v267 = vpop.f32.mrb[0].mxu0
    %v268 = vadd.f32 %v64, %v267
    %v269 = vpop.f32.mrb[0].mxu0
    %v270 = vadd.f32 %v68, %v269
    %271 = vdwg.mxu0
    %272 = vst [vmem:[#allocation2] sm:$0xff] %v161
    %273 = vst [vmem:[#allocation2 + $0x8] sm:$0xff] %v163
    %274 = vst [vmem:[#allocation2 + $0x10] sm:$0xff] %v234
    %275 = vst [vmem:[#allocation2 + $0x18] sm:$0xff] %v236
    %276 = vst [vmem:[#allocation2 + $0x20] sm:$0xff] %v165
    %277 = vst [vmem:[#allocation2 + $0x28] sm:$0xff] %v167
    %278 = vst [vmem:[#allocation2 + $0x30] sm:$0xff] %v238
    %279 = vst [vmem:[#allocation2 + $0x38] sm:$0xff] %v240
    %280 = vst [vmem:[#allocation2 + $0x40] sm:$0xff] %v171
    %281 = vst [vmem:[#allocation2 + $0x48] sm:$0xff] %v173
    %282 = vst [vmem:[#allocation2 + $0x50] sm:$0xff] %v244
    %283 = vst [vmem:[#allocation2 + $0x58] sm:$0xff] %v246
    %284 = vst [vmem:[#allocation2 + $0x60] sm:$0xff] %v175
    %285 = vst [vmem:[#allocation2 + $0x68] sm:$0xff] %v177
    %286 = vst [vmem:[#allocation2 + $0x70] sm:$0xff] %v248
    %287 = vst [vmem:[#allocation2 + $0x78] sm:$0xff] %v250
    %288 = vst [vmem:[#allocation2 + $0x80] sm:$0xff] %v181
    %289 = vst [vmem:[#allocation2 + $0x88] sm:$0xff] %v183
    %290 = vst [vmem:[#allocation2 + $0x90] sm:$0xff] %v254
    %291 = vst [vmem:[#allocation2 + $0x98] sm:$0xff] %v256
    %292 = vst [vmem:[#allocation2 + $0xa0] sm:$0xff] %v185
    %293 = vst [vmem:[#allocation2 + $0xa8] sm:$0xff] %v187
    %294 = vst [vmem:[#allocation2 + $0xb0] sm:$0xff] %v258
    %295 = vst [vmem:[#allocation2 + $0xb8] sm:$0xff] %v260
    %296 = vst [vmem:[#allocation2 + $0xc0] sm:$0xff] %v191
    %297 = vst [vmem:[#allocation2 + $0xc8] sm:$0xff] %v193
    %298 = vst [vmem:[#allocation2 + $0xd0] sm:$0xff] %v264
    %299 = vst [vmem:[#allocation2 + $0xd8] sm:$0xff] %v266
    %300 = vst [vmem:[#allocation2 + $0xe0] sm:$0xff] %v195
    %301 = vst [vmem:[#allocation2 + $0xe8] sm:$0xff] %v197
    %302 = vst [vmem:[#allocation2 + $0xf0] sm:$0xff] %v268
    %303 = vst [vmem:[#allocation2 + $0xf8] sm:$0xff] %v270
    %v304 = vld [vmem:[#allocation3] sm:$0xff]
    %v305 = vld [vmem:[#allocation3 + $0x8] sm:$0xff]
    %v306 = vld [vmem:[#allocation3 + $0x10] sm:$0xff]
    %v307 = vld [vmem:[#allocation3 + $0x18] sm:$0xff]
    %v308 = vld [vmem:[#allocation3 + $0x20] sm:$0xff]
    %v309 = vld [vmem:[#allocation3 + $0x28] sm:$0xff]
    %v310 = vld [vmem:[#allocation3 + $0x30] sm:$0xff]
    %v311 = vld [vmem:[#allocation3 + $0x38] sm:$0xff]
    %v312 = vld [vmem:[#allocation3 + $0x40] sm:$0xff]
    %v313 = vld [vmem:[#allocation3 + $0x48] sm:$0xff]
    %v314 = vld [vmem:[#allocation3 + $0x50] sm:$0xff]
    %v315 = vld [vmem:[#allocation3 + $0x58] sm:$0xff]
    %v316 = vld [vmem:[#allocation3 + $0x60] sm:$0xff]
    %v317 = vld [vmem:[#allocation3 + $0x68] sm:$0xff]
    %v318 = vld [vmem:[#allocation3 + $0x70] sm:$0xff]
    %v319 = vld [vmem:[#allocation3 + $0x78] sm:$0xff]
    %v320 = vld [vmem:[#allocation3 + $0x80] sm:$0xff]
    %v321 = vld [vmem:[#allocation3 + $0x88] sm:$0xff]
    %v322 = vld [vmem:[#allocation3 + $0x90] sm:$0xff]
    %v323 = vld [vmem:[#allocation3 + $0x98] sm:$0xff]
    %v324 = vld [vmem:[#allocation3 + $0xa0] sm:$0xff]
    %v325 = vld [vmem:[#allocation3 + $0xa8] sm:$0xff]
    %v326 = vld [vmem:[#allocation3 + $0xb0] sm:$0xff]
    %v327 = vld [vmem:[#allocation3 + $0xb8] sm:$0xff]
    %v328 = vld [vmem:[#allocation3 + $0xc0] sm:$0xff]
    %v329 = vld [vmem:[#allocation3 + $0xc8] sm:$0xff]
    %v330 = vld [vmem:[#allocation3 + $0xd0] sm:$0xff]
    %v331 = vld [vmem:[#allocation3 + $0xd8] sm:$0xff]
    %v332 = vld [vmem:[#allocation3 + $0xe0] sm:$0xff]
    %v333 = vld [vmem:[#allocation3 + $0xe8] sm:$0xff]
    %v334 = vld [vmem:[#allocation3 + $0xf0] sm:$0xff]
    %v335 = vld [vmem:[#allocation3 + $0xf8] sm:$0xff]
    %v336 = vld [vmem:[#allocation2] sm:$0xff]
    %v337 = vld [vmem:[#allocation2 + $0x8] sm:$0xff]
    %v338 = vld [vmem:[#allocation2 + $0x10] sm:$0xff]
    %v339 = vld [vmem:[#allocation2 + $0x18] sm:$0xff]
    %v372 = vunpack.c.l.b16 %v304
    %v373 = vunpack.c.h.b16 %v304
    %v374 = vunpack.c.l.b16 %v305
    %v375 = vunpack.c.h.b16 %v305
    %v376 = vunpack.c.l.b16 %v306
    %v377 = vunpack.c.h.b16 %v306
    %v378 = vunpack.c.l.b16 %v307
    %v379 = vunpack.c.h.b16 %v307
    %v380 = vunpack.c.l.b16 %v308
    %v381 = vunpack.c.h.b16 %v308
    %v382 = vunpack.c.l.b16 %v309
    %v383 = vunpack.c.h.b16 %v309
    %v384 = vunpack.c.l.b16 %v310
    %v385 = vunpack.c.h.b16 %v310
    %v386 = vunpack.c.l.b16 %v311
    %v387 = vunpack.c.h.b16 %v311
    %v388 = vunpack.c.l.b16 %v312
    %v389 = vunpack.c.h.b16 %v312
    %v390 = vunpack.c.l.b16 %v313
    %v391 = vunpack.c.h.b16 %v313
    %v392 = vunpack.c.l.b16 %v314
    %v393 = vunpack.c.h.b16 %v314
    %v394 = vunpack.c.l.b16 %v315
    %v395 = vunpack.c.h.b16 %v315
    %v396 = vunpack.c.l.b16 %v316
    %v397 = vunpack.c.h.b16 %v316
    %v398 = vunpack.c.l.b16 %v317
    %v399 = vunpack.c.h.b16 %v317
    %v400 = vunpack.c.l.b16 %v318
    %v401 = vunpack.c.h.b16 %v318
    %v402 = vunpack.c.l.b16 %v319
    %v403 = vunpack.c.h.b16 %v319
    %v404 = vunpack.c.l.b16 %v320
    %v405 = vunpack.c.h.b16 %v320
    %v406 = vunpack.c.l.b16 %v321
    %v407 = vunpack.c.h.b16 %v321
    %v408 = vunpack.c.l.b16 %v322
    %v409 = vunpack.c.h.b16 %v322
    %v410 = vunpack.c.l.b16 %v323
    %v411 = vunpack.c.h.b16 %v323
    %v412 = vunpack.c.l.b16 %v324
    %v413 = vunpack.c.h.b16 %v324
    %v414 = vunpack.c.l.b16 %v325
    %v415 = vunpack.c.h.b16 %v325
    %v416 = vunpack.c.l.b16 %v326
    %v417 = vunpack.c.h.b16 %v326
    %v418 = vunpack.c.l.b16 %v327
    %v419 = vunpack.c.h.b16 %v327
    %v420 = vunpack.c.l.b16 %v328
    %v421 = vunpack.c.h.b16 %v328
    %v422 = vunpack.c.l.b16 %v329
    %v423 = vunpack.c.h.b16 %v329
    %v424 = vunpack.c.l.b16 %v330
    %v425 = vunpack.c.h.b16 %v330
    %v426 = vunpack.c.l.b16 %v331
    %v427 = vunpack.c.h.b16 %v331
    %v428 = vunpack.c.l.b16 %v332
    %v429 = vunpack.c.h.b16 %v332
    %v430 = vunpack.c.l.b16 %v333
    %v431 = vunpack.c.h.b16 %v333
    %v432 = vunpack.c.l.b16 %v334
    %v433 = vunpack.c.h.b16 %v334
    %v434 = vunpack.c.l.b16 %v335
    %v435 = vunpack.c.h.b16 %v335
    %v436 = vpack.c.b16 %v376, %v372
    %v437 = vpack.c.b16 %v377, %v373
    %v438 = vpack.c.b16 %v378, %v374
    %v439 = vpack.c.b16 %v379, %v375
    %v440 = vpack.c.b16 %v384, %v380
    %v441 = vpack.c.b16 %v385, %v381
    %v442 = vpack.c.b16 %v386, %v382
    %v443 = vpack.c.b16 %v387, %v383
    %v444 = vpack.c.b16 %v392, %v388
    %v445 = vpack.c.b16 %v393, %v389
    %v446 = vpack.c.b16 %v394, %v390
    %v447 = vpack.c.b16 %v395, %v391
    %v448 = vpack.c.b16 %v400, %v396
    %v449 = vpack.c.b16 %v401, %v397
    %v450 = vpack.c.b16 %v402, %v398
    %v451 = vpack.c.b16 %v403, %v399
    %v452 = vpack.c.b16 %v408, %v404
    %v453 = vpack.c.b16 %v409, %v405
    %v454 = vpack.c.b16 %v410, %v406
    %v455 = vpack.c.b16 %v411, %v407
    %v456 = vpack.c.b16 %v416, %v412
    %v457 = vpack.c.b16 %v417, %v413
    %v458 = vpack.c.b16 %v418, %v414
    %v459 = vpack.c.b16 %v419, %v415
    %v460 = vpack.c.b16 %v424, %v420
    %v461 = vpack.c.b16 %v425, %v421
    %v462 = vpack.c.b16 %v426, %v422
    %v463 = vpack.c.b16 %v427, %v423
    %v464 = vpack.c.b16 %v432, %v428
    %v465 = vpack.c.b16 %v433, %v429
    %v466 = vpack.c.b16 %v434, %v430
    %v467 = vpack.c.b16 %v435, %v431
    %500 = vmatprep.subr.bf16.mxu0 %v437
    %501 = vmatpush1.bf16.msra.mxu0 %v436
    %502 = vmatprep.subr.bf16.mxu0 %v441
    %503 = vmatpush1.bf16.msra.mxu0 %v440
    %504 = vmatprep.subr.bf16.mxu0 %v445
    %505 = vmatpush1.bf16.msra.mxu0 %v444
    %506 = vmatprep.subr.bf16.mxu0 %v449
    %507 = vmatpush1.bf16.msra.mxu0 %v448
    %508 = vmatprep.subr.bf16.mxu0 %v453
    %509 = vmatpush1.bf16.msra.mxu0 %v452
    %510 = vmatprep.subr.bf16.mxu0 %v457
    %511 = vmatpush1.bf16.msra.mxu0 %v456
    %512 = vmatprep.subr.bf16.mxu0 %v461
    %513 = vmatpush1.bf16.msra.mxu0 %v460
    %514 = vmatprep.subr.bf16.mxu0 %v465
    %515 = vmatpush1.bf16.msra.mxu0 %v464
    %516 = vmatprep.subr.bf16.mxu0 0
    %517 = vmatpush1.bf16.msra.mxu0 0
    %518 = vmatprep.subr.bf16.mxu0 0
    %519 = vmatpush1.bf16.msra.mxu0 0
    %520 = vmatprep.subr.bf16.mxu0 0
    %521 = vmatpush1.bf16.msra.mxu0 0
    %522 = vmatprep.subr.bf16.mxu0 0
    %523 = vmatpush1.bf16.msra.mxu0 0
    %524 = vmatprep.subr.bf16.mxu0 0
    %525 = vmatpush1.bf16.msra.mxu0 0
    %526 = vmatprep.subr.bf16.mxu0 0
    %527 = vmatpush1.bf16.msra.mxu0 0
    %528 = vmatprep.subr.bf16.mxu0 0
    %529 = vmatpush1.bf16.msra.mxu0 0
    %530 = vmatprep.subr.bf16.mxu0 0
    %531 = vmatpush1.bf16.msra.mxu0 0
    %532 = vmatprep.mubr.bf16.mxu0 0
    %533 = vmatmul.mubr.bf16.gmra.mrb[0].mxu0 0
    %v534 = vpop.f32.mrb[0].mxu0
    %v535 = vadd.f32 0.0, %v534
    %v536 = vpop.f32.mrb[0].mxu0
    %v537 = vadd.f32 0.0, %v536
    %v538 = vpop.f32.mrb[0].mxu0
    %v539 = vpop.f32.mrb[0].mxu0
    %540 = vdwg.mxu0
    %541 = vmatprep.subr.bf16.mxu0 %v439
    %542 = vmatpush1.bf16.msra.mxu0 %v438
    %543 = vmatprep.subr.bf16.mxu0 %v443
    %544 = vmatpush1.bf16.msra.mxu0 %v442
    %545 = vmatprep.subr.bf16.mxu0 %v447
    %546 = vmatpush1.bf16.msra.mxu0 %v446
    %547 = vmatprep.subr.bf16.mxu0 %v451
    %548 = vmatpush1.bf16.msra.mxu0 %v450
    %549 = vmatprep.subr.bf16.mxu0 %v455
    %550 = vmatpush1.bf16.msra.mxu0 %v454
    %551 = vmatprep.subr.bf16.mxu0 %v459
    %552 = vmatpush1.bf16.msra.mxu0 %v458
    %553 = vmatprep.subr.bf16.mxu0 %v463
    %554 = vmatpush1.bf16.msra.mxu0 %v462
    %555 = vmatprep.subr.bf16.mxu0 %v467
    %556 = vmatpush1.bf16.msra.mxu0 %v466
    %557 = vmatprep.subr.bf16.mxu0 0
    %558 = vmatpush1.bf16.msra.mxu0 0
    %559 = vmatprep.subr.bf16.mxu0 0
    %560 = vmatpush1.bf16.msra.mxu0 0
    %561 = vmatprep.subr.bf16.mxu0 0
    %562 = vmatpush1.bf16.msra.mxu0 0
    %563 = vmatprep.subr.bf16.mxu0 0
    %564 = vmatpush1.bf16.msra.mxu0 0
    %565 = vmatprep.subr.bf16.mxu0 0
    %566 = vmatpush1.bf16.msra.mxu0 0
    %567 = vmatprep.subr.bf16.mxu0 0
    %568 = vmatpush1.bf16.msra.mxu0 0
    %569 = vmatprep.subr.bf16.mxu0 0
    %570 = vmatpush1.bf16.msra.mxu0 0
    %571 = vmatprep.subr.bf16.mxu0 0
    %572 = vmatpush1.bf16.msra.mxu0 0
    %573 = vmatprep.mubr.bf16.mxu0 0
    %574 = vmatmul.mubr.bf16.gmra.mrb[0].mxu0 0
    %v575 = vpop.f32.mrb[0].mxu0
    %v576 = vadd.f32 0.0, %v575
    %v577 = vpop.f32.mrb[0].mxu0
    %v578 = vadd.f32 0.0, %v577
    %v579 = vpop.f32.mrb[0].mxu0
    %v580 = vpop.f32.mrb[0].mxu0
    %581 = vdwg.mxu0
    %v582 = vadd.f32 %v336, %v535
    %v583 = vadd.f32 %v337, %v537
    %v584 = vadd.f32 %v338, %v576
    %v585 = vadd.f32 %v339, %v578
    %v586 = vxor.u32 %v582, 2147483648
    %v587 = vxor.u32 %v583, 2147483648
    %v588 = vxor.u32 %v584, 2147483648
    %v589 = vmul.f32 %v586, 1.442695
    %v590 = vpow.pop %v589
    %v591 = vmul.f32 %v587, 1.442695
    %v592 = vpow.pop %v591
    %v593 = vmul.f32 %v588, 1.442695
    %v594 = vpow.pop %v593
    %v595 = vadd.f32 %v590, 1.0
    %v596 = vadd.f32 %v592, 1.0
    %v597 = vadd.f32 %v594, 1.0
    %v598 = vrcp.pop %v595
    %v599 = vmul.f32 1.0, %v598
    %v600 = vrcp.pop %v596
    %v601 = vmul.f32 1.0, %v600
    %v602 = vrcp.pop %v597
    %v603 = vmul.f32 1.0, %v602
    %v604 = vtanh.pop %v585
    %v605 = vmul.f32 %v601, 0.0
    %v606 = vmul.f32 %v599, %v604
    %v607 = vadd.f32 %v605, %v606
    %v608 = vtanh.pop %v607
    %v609 = vmul.f32 %v603, %v608
    %s610 = scalar_lea.vmem [#allocation2], 32
    %v611 = vld [vmem:[%s610] sm:$0xff]
    %v612 = vld [vmem:[%s610 + $0x8] sm:$0xff]
    %v613 = vld [vmem:[%s610 + $0x10] sm:$0xff]
    %v614 = vld [vmem:[%s610 + $0x18] sm:$0xff]
    %v615 = vpack.c.bf16 %v609, %v609
    %616 = vmatprep.subr.bf16.mxu0 %v437
    %617 = vmatpush1.bf16.msra.mxu0 %v436
    %618 = vmatprep.subr.bf16.mxu0 %v441
    %619 = vmatpush1.bf16.msra.mxu0 %v440
    %620 = vmatprep.subr.bf16.mxu0 %v445
    %621 = vmatpush1.bf16.msra.mxu0 %v444
    %622 = vmatprep.subr.bf16.mxu0 %v449
    %623 = vmatpush1.bf16.msra.mxu0 %v448
    %624 = vmatprep.subr.bf16.mxu0 %v453
    %625 = vmatpush1.bf16.msra.mxu0 %v452
    %626 = vmatprep.subr.bf16.mxu0 %v457
    %627 = vmatpush1.bf16.msra.mxu0 %v456
    %628 = vmatprep.subr.bf16.mxu0 %v461
    %629 = vmatpush1.bf16.msra.mxu0 %v460
    %630 = vmatprep.subr.bf16.mxu0 %v465
    %631 = vmatpush1.bf16.msra.mxu0 %v464
    %632 = vmatprep.subr.bf16.mxu0 0
    %633 = vmatpush1.bf16.msra.mxu0 0
    %634 = vmatprep.subr.bf16.mxu0 0
    %635 = vmatpush1.bf16.msra.mxu0 0
    %636 = vmatprep.subr.bf16.mxu0 0
    %637 = vmatpush1.bf16.msra.mxu0 0
    %638 = vmatprep.subr.bf16.mxu0 0
    %639 = vmatpush1.bf16.msra.mxu0 0
    %640 = vmatprep.subr.bf16.mxu0 0
    %641 = vmatpush1.bf16.msra.mxu0 0
    %642 = vmatprep.subr.bf16.mxu0 0
    %643 = vmatpush1.bf16.msra.mxu0 0
    %644 = vmatprep.subr.bf16.mxu0 0
    %645 = vmatpush1.bf16.msra.mxu0 0
    %646 = vmatprep.subr.bf16.mxu0 0
    %647 = vmatpush1.bf16.msra.mxu0 0
    %648 = vmatprep.mubr.bf16.mxu0 0
    %649 = vmatmul.mubr.bf16.gmra.mrb[0].mxu0 %v615
    %v650 = vpop.f32.mrb[0].mxu0
    %v651 = vadd.f32 0.0, %v650
    %v652 = vpop.f32.mrb[0].mxu0
    %v653 = vadd.f32 0.0, %v652
    %v654 = vpop.f32.mrb[0].mxu0
    %v655 = vpop.f32.mrb[0].mxu0
    %656 = vdwg.mxu0
    %657 = vmatprep.subr.bf16.mxu0 %v439
    %658 = vmatpush1.bf16.msra.mxu0 %v438
    %659 = vmatprep.subr.bf16.mxu0 %v443
    %660 = vmatpush1.bf16.msra.mxu0 %v442
    %661 = vmatprep.subr.bf16.mxu0 %v447
    %662 = vmatpush1.bf16.msra.mxu0 %v446
    %663 = vmatprep.subr.bf16.mxu0 %v451
    %664 = vmatpush1.bf16.msra.mxu0 %v450
    %665 = vmatprep.subr.bf16.mxu0 %v455
    %666 = vmatpush1.bf16.msra.mxu0 %v454
    %667 = vmatprep.subr.bf16.mxu0 %v459
    %668 = vmatpush1.bf16.msra.mxu0 %v458
    %669 = vmatprep.subr.bf16.mxu0 %v463
    %670 = vmatpush1.bf16.msra.mxu0 %v462
    %671 = vmatprep.subr.bf16.mxu0 %v467
    %672 = vmatpush1.bf16.msra.mxu0 %v466
    %673 = vmatprep.subr.bf16.mxu0 0
    %674 = vmatpush1.bf16.msra.mxu0 0
    %675 = vmatprep.subr.bf16.mxu0 0
    %676 = vmatpush1.bf16.msra.mxu0 0
    %677 = vmatprep.subr.bf16.mxu0 0
    %678 = vmatpush1.bf16.msra.mxu0 0
    %679 = vmatprep.subr.bf16.mxu0 0
    %680 = vmatpush1.bf16.msra.mxu0 0
    %681 = vmatprep.subr.bf16.mxu0 0
    %682 = vmatpush1.bf16.msra.mxu0 0
    %683 = vmatprep.subr.bf16.mxu0 0
    %684 = vmatpush1.bf16.msra.mxu0 0
    %685 = vmatprep.subr.bf16.mxu0 0
    %686 = vmatpush1.bf16.msra.mxu0 0
    %687 = vmatprep.subr.bf16.mxu0 0
    %688 = vmatpush1.bf16.msra.mxu0 0
    %689 = vmatprep.mubr.bf16.mxu0 0
    %690 = vmatmul.mubr.bf16.gmra.mrb[0].mxu0 %v615
    %v691 = vpop.f32.mrb[0].mxu0
    %v692 = vadd.f32 0.0, %v691
    %v693 = vpop.f32.mrb[0].mxu0
    %v694 = vadd.f32 0.0, %v693
    %v695 = vpop.f32.mrb[0].mxu0
    %v696 = vpop.f32.mrb[0].mxu0
    %697 = vdwg.mxu0
    %v698 = vadd.f32 %v611, %v651
    %v699 = vadd.f32 %v612, %v653
    %v700 = vadd.f32 %v613, %v692
    %v701 = vadd.f32 %v614, %v694
    %v702 = vxor.u32 %v698, 2147483648
    %v703 = vxor.u32 %v699, 2147483648
    %v704 = vxor.u32 %v700, 2147483648
    %v705 = vmul.f32 %v702, 1.442695
    %v706 = vpow.pop %v705
    %v707 = vmul.f32 %v703, 1.442695
    %v708 = vpow.pop %v707
    %v709 = vmul.f32 %v704, 1.442695
    %v710 = vpow.pop %v709
    %v711 = vadd.f32 %v706, 1.0
    %v712 = vadd.f32 %v708, 1.0
    %v713 = vadd.f32 %v710, 1.0
    %v714 = vrcp.pop %v711
    %v715 = vmul.f32 1.0, %v714
    %v716 = vrcp.pop %v712
    %v717 = vmul.f32 1.0, %v716
    %v718 = vrcp.pop %v713
    %v719 = vmul.f32 1.0, %v718
    %v720 = vtanh.pop %v701
    %v721 = vmul.f32 %v717, %v607
    %v722 = vmul.f32 %v715, %v720
    %v723 = vadd.f32 %v721, %v722
    %v724 = vtanh.pop %v723
    %v725 = vmul.f32 %v719, %v724
    %s726 = scalar_lea.vmem [#allocation2], 64
    %v727 = vld [vmem:[%s726] sm:$0xff]
    %v728 = vld [vmem:[%s726 + $0x8] sm:$0xff]
    %v729 = vld [vmem:[%s726 + $0x10] sm:$0xff]
    %v730 = vld [vmem:[%s726 + $0x18] sm:$0xff]
    %v731 = vpack.c.bf16 %v725, %v725
    %732 = vmatprep.subr.bf16.mxu0 %v437
    %733 = vmatpush1.bf16.msra.mxu0 %v436
    %734 = vmatprep.subr.bf16.mxu0 %v441
    %735 = vmatpush1.bf16.msra.mxu0 %v440
    %736 = vmatprep.subr.bf16.mxu0 %v445
    %737 = vmatpush1.bf16.msra.mxu0 %v444
    %738 = vmatprep.subr.bf16.mxu0 %v449
    %739 = vmatpush1.bf16.msra.mxu0 %v448
    %740 = vmatprep.subr.bf16.mxu0 %v453
    %741 = vmatpush1.bf16.msra.mxu0 %v452
    %742 = vmatprep.subr.bf16.mxu0 %v457
    %743 = vmatpush1.bf16.msra.mxu0 %v456
    %744 = vmatprep.subr.bf16.mxu0 %v461
    %745 = vmatpush1.bf16.msra.mxu0 %v460
    %746 = vmatprep.subr.bf16.mxu0 %v465
    %747 = vmatpush1.bf16.msra.mxu0 %v464
    %748 = vmatprep.subr.bf16.mxu0 0
    %749 = vmatpush1.bf16.msra.mxu0 0
    %750 = vmatprep.subr.bf16.mxu0 0
    %751 = vmatpush1.bf16.msra.mxu0 0
    %752 = vmatprep.subr.bf16.mxu0 0
    %753 = vmatpush1.bf16.msra.mxu0 0
    %754 = vmatprep.subr.bf16.mxu0 0
    %755 = vmatpush1.bf16.msra.mxu0 0
    %756 = vmatprep.subr.bf16.mxu0 0
    %757 = vmatpush1.bf16.msra.mxu0 0
    %758 = vmatprep.subr.bf16.mxu0 0
    %759 = vmatpush1.bf16.msra.mxu0 0
    %760 = vmatprep.subr.bf16.mxu0 0
    %761 = vmatpush1.bf16.msra.mxu0 0
    %762 = vmatprep.subr.bf16.mxu0 0
    %763 = vmatpush1.bf16.msra.mxu0 0
    %764 = vmatprep.mubr.bf16.mxu0 0
    %765 = vmatmul.mubr.bf16.gmra.mrb[0].mxu0 %v731
    %v766 = vpop.f32.mrb[0].mxu0
    %v767 = vadd.f32 0.0, %v766
    %v768 = vpop.f32.mrb[0].mxu0
    %v769 = vadd.f32 0.0, %v768
    %v770 = vpop.f32.mrb[0].mxu0
    %v771 = vpop.f32.mrb[0].mxu0
    %772 = vdwg.mxu0
    %773 = vmatprep.subr.bf16.mxu0 %v439
    %774 = vmatpush1.bf16.msra.mxu0 %v438
    %775 = vmatprep.subr.bf16.mxu0 %v443
    %776 = vmatpush1.bf16.msra.mxu0 %v442
    %777 = vmatprep.subr.bf16.mxu0 %v447
    %778 = vmatpush1.bf16.msra.mxu0 %v446
    %779 = vmatprep.subr.bf16.mxu0 %v451
    %780 = vmatpush1.bf16.msra.mxu0 %v450
    %781 = vmatprep.subr.bf16.mxu0 %v455
    %782 = vmatpush1.bf16.msra.mxu0 %v454
    %783 = vmatprep.subr.bf16.mxu0 %v459
    %784 = vmatpush1.bf16.msra.mxu0 %v458
    %785 = vmatprep.subr.bf16.mxu0 %v463
    %786 = vmatpush1.bf16.msra.mxu0 %v462
    %787 = vmatprep.subr.bf16.mxu0 %v467
    %788 = vmatpush1.bf16.msra.mxu0 %v466
    %789 = vmatprep.subr.bf16.mxu0 0
    %790 = vmatpush1.bf16.msra.mxu0 0
    %791 = vmatprep.subr.bf16.mxu0 0
    %792 = vmatpush1.bf16.msra.mxu0 0
    %793 = vmatprep.subr.bf16.mxu0 0
    %794 = vmatpush1.bf16.msra.mxu0 0
    %795 = vmatprep.subr.bf16.mxu0 0
    %796 = vmatpush1.bf16.msra.mxu0 0
    %797 = vmatprep.subr.bf16.mxu0 0
    %798 = vmatpush1.bf16.msra.mxu0 0
    %799 = vmatprep.subr.bf16.mxu0 0
    %800 = vmatpush1.bf16.msra.mxu0 0
    %801 = vmatprep.subr.bf16.mxu0 0
    %802 = vmatpush1.bf16.msra.mxu0 0
    %803 = vmatprep.subr.bf16.mxu0 0
    %804 = vmatpush1.bf16.msra.mxu0 0
    %805 = vmatprep.mubr.bf16.mxu0 0
    %806 = vmatmul.mubr.bf16.gmra.mrb[0].mxu0 %v731
    %v807 = vpop.f32.mrb[0].mxu0
    %v808 = vadd.f32 0.0, %v807
    %v809 = vpop.f32.mrb[0].mxu0
    %v810 = vadd.f32 0.0, %v809
    %v811 = vpop.f32.mrb[0].mxu0
    %v812 = vpop.f32.mrb[0].mxu0
    %813 = vdwg.mxu0
    %v814 = vadd.f32 %v727, %v767
    %v815 = vadd.f32 %v728, %v769
    %v816 = vadd.f32 %v729, %v808
    %v817 = vadd.f32 %v730, %v810
    %v818 = vxor.u32 %v814, 2147483648
    %v819 = vxor.u32 %v815, 2147483648
    %v820 = vxor.u32 %v816, 2147483648
    %v821 = vmul.f32 %v818, 1.442695
    %v822 = vpow.pop %v821
    %v823 = vmul.f32 %v819, 1.442695
    %v824 = vpow.pop %v823
    %v825 = vmul.f32 %v820, 1.442695
    %v826 = vpow.pop %v825
    %v827 = vadd.f32 %v822, 1.0
    %v828 = vadd.f32 %v824, 1.0
    %v829 = vadd.f32 %v826, 1.0
    %v830 = vrcp.pop %v827
    %v831 = vmul.f32 1.0, %v830
    %v832 = vrcp.pop %v828
    %v833 = vmul.f32 1.0, %v832
    %v834 = vrcp.pop %v829
    %v835 = vmul.f32 1.0, %v834
    %v836 = vtanh.pop %v817
    %v837 = vmul.f32 %v833, %v723
    %v838 = vmul.f32 %v831, %v836
    %v839 = vadd.f32 %v837, %v838
    %v840 = vtanh.pop %v839
    %v841 = vmul.f32 %v835, %v840
    %s842 = scalar_lea.vmem [#allocation2], 96
    %v843 = vld [vmem:[%s842] sm:$0xff]
    %v844 = vld [vmem:[%s842 + $0x8] sm:$0xff]
    %v845 = vld [vmem:[%s842 + $0x10] sm:$0xff]
    %v846 = vld [vmem:[%s842 + $0x18] sm:$0xff]
    %v847 = vpack.c.bf16 %v841, %v841
    %848 = vmatprep.subr.bf16.mxu0 %v437
    %849 = vmatpush1.bf16.msra.mxu0 %v436
    %850 = vmatprep.subr.bf16.mxu0 %v441
    %851 = vmatpush1.bf16.msra.mxu0 %v440
    %852 = vmatprep.subr.bf16.mxu0 %v445
    %853 = vmatpush1.bf16.msra.mxu0 %v444
    %854 = vmatprep.subr.bf16.mxu0 %v449
    %855 = vmatpush1.bf16.msra.mxu0 %v448
    %856 = vmatprep.subr.bf16.mxu0 %v453
    %857 = vmatpush1.bf16.msra.mxu0 %v452
    %858 = vmatprep.subr.bf16.mxu0 %v457
    %859 = vmatpush1.bf16.msra.mxu0 %v456
    %860 = vmatprep.subr.bf16.mxu0 %v461
    %861 = vmatpush1.bf16.msra.mxu0 %v460
    %862 = vmatprep.subr.bf16.mxu0 %v465
    %863 = vmatpush1.bf16.msra.mxu0 %v464
    %864 = vmatprep.subr.bf16.mxu0 0
    %865 = vmatpush1.bf16.msra.mxu0 0
    %866 = vmatprep.subr.bf16.mxu0 0
    %867 = vmatpush1.bf16.msra.mxu0 0
    %868 = vmatprep.subr.bf16.mxu0 0
    %869 = vmatpush1.bf16.msra.mxu0 0
    %870 = vmatprep.subr.bf16.mxu0 0
    %871 = vmatpush1.bf16.msra.mxu0 0
    %872 = vmatprep.subr.bf16.mxu0 0
    %873 = vmatpush1.bf16.msra.mxu0 0
    %874 = vmatprep.subr.bf16.mxu0 0
    %875 = vmatpush1.bf16.msra.mxu0 0
    %876 = vmatprep.subr.bf16.mxu0 0
    %877 = vmatpush1.bf16.msra.mxu0 0
    %878 = vmatprep.subr.bf16.mxu0 0
    %879 = vmatpush1.bf16.msra.mxu0 0
    %880 = vmatprep.mubr.bf16.mxu0 0
    %881 = vmatmul.mubr.bf16.gmra.mrb[0].mxu0 %v847
    %v882 = vpop.f32.mrb[0].mxu0
    %v883 = vadd.f32 0.0, %v882
    %v884 = vpop.f32.mrb[0].mxu0
    %v885 = vadd.f32 0.0, %v884
    %v886 = vpop.f32.mrb[0].mxu0
    %v887 = vpop.f32.mrb[0].mxu0
    %888 = vdwg.mxu0
    %889 = vmatprep.subr.bf16.mxu0 %v439
    %890 = vmatpush1.bf16.msra.mxu0 %v438
    %891 = vmatprep.subr.bf16.mxu0 %v443
    %892 = vmatpush1.bf16.msra.mxu0 %v442
    %893 = vmatprep.subr.bf16.mxu0 %v447
    %894 = vmatpush1.bf16.msra.mxu0 %v446
    %895 = vmatprep.subr.bf16.mxu0 %v451
    %896 = vmatpush1.bf16.msra.mxu0 %v450
    %897 = vmatprep.subr.bf16.mxu0 %v455
    %898 = vmatpush1.bf16.msra.mxu0 %v454
    %899 = vmatprep.subr.bf16.mxu0 %v459
    %900 = vmatpush1.bf16.msra.mxu0 %v458
    %901 = vmatprep.subr.bf16.mxu0 %v463
    %902 = vmatpush1.bf16.msra.mxu0 %v462
    %903 = vmatprep.subr.bf16.mxu0 %v467
    %904 = vmatpush1.bf16.msra.mxu0 %v466
    %905 = vmatprep.subr.bf16.mxu0 0
    %906 = vmatpush1.bf16.msra.mxu0 0
    %907 = vmatprep.subr.bf16.mxu0 0
    %908 = vmatpush1.bf16.msra.mxu0 0
    %909 = vmatprep.subr.bf16.mxu0 0
    %910 = vmatpush1.bf16.msra.mxu0 0
    %911 = vmatprep.subr.bf16.mxu0 0
    %912 = vmatpush1.bf16.msra.mxu0 0
    %913 = vmatprep.subr.bf16.mxu0 0
    %914 = vmatpush1.bf16.msra.mxu0 0
    %915 = vmatprep.subr.bf16.mxu0 0
    %916 = vmatpush1.bf16.msra.mxu0 0
    %917 = vmatprep.subr.bf16.mxu0 0
    %918 = vmatpush1.bf16.msra.mxu0 0
    %919 = vmatprep.subr.bf16.mxu0 0
    %920 = vmatpush1.bf16.msra.mxu0 0
    %921 = vmatprep.mubr.bf16.mxu0 0
    %922 = vmatmul.mubr.bf16.gmra.mrb[0].mxu0 %v847
    %v923 = vpop.f32.mrb[0].mxu0
    %v924 = vadd.f32 0.0, %v923
    %v925 = vpop.f32.mrb[0].mxu0
    %v926 = vadd.f32 0.0, %v925
    %v927 = vpop.f32.mrb[0].mxu0
    %v928 = vpop.f32.mrb[0].mxu0
    %929 = vdwg.mxu0
    %v930 = vadd.f32 %v843, %v883
    %v931 = vadd.f32 %v844, %v885
    %v932 = vadd.f32 %v845, %v924
    %v933 = vadd.f32 %v846, %v926
    %v934 = vxor.u32 %v930, 2147483648
    %v935 = vxor.u32 %v931, 2147483648
    %v936 = vxor.u32 %v932, 2147483648
    %v937 = vmul.f32 %v934, 1.442695
    %v938 = vpow.pop %v937
    %v939 = vmul.f32 %v935, 1.442695
    %v940 = vpow.pop %v939
    %v941 = vmul.f32 %v936, 1.442695
    %v942 = vpow.pop %v941
    %v943 = vadd.f32 %v938, 1.0
    %v944 = vadd.f32 %v940, 1.0
    %v945 = vadd.f32 %v942, 1.0
    %v946 = vrcp.pop %v943
    %v947 = vmul.f32 1.0, %v946
    %v948 = vrcp.pop %v944
    %v949 = vmul.f32 1.0, %v948
    %v950 = vrcp.pop %v945
    %v951 = vmul.f32 1.0, %v950
    %v952 = vtanh.pop %v933
    %v953 = vmul.f32 %v949, %v839
    %v954 = vmul.f32 %v947, %v952
    %v955 = vadd.f32 %v953, %v954
    %v956 = vtanh.pop %v955
    %v957 = vmul.f32 %v951, %v956
    %s958 = scalar_lea.vmem [#allocation2], 128
    %v959 = vld [vmem:[%s958] sm:$0xff]
    %v960 = vld [vmem:[%s958 + $0x8] sm:$0xff]
    %v961 = vld [vmem:[%s958 + $0x10] sm:$0xff]
    %v962 = vld [vmem:[%s958 + $0x18] sm:$0xff]
    %v963 = vpack.c.bf16 %v957, %v957
    %964 = vmatprep.subr.bf16.mxu0 %v437
    %965 = vmatpush1.bf16.msra.mxu0 %v436
    %966 = vmatprep.subr.bf16.mxu0 %v441
    %967 = vmatpush1.bf16.msra.mxu0 %v440
    %968 = vmatprep.subr.bf16.mxu0 %v445
    %969 = vmatpush1.bf16.msra.mxu0 %v444
    %970 = vmatprep.subr.bf16.mxu0 %v449
    %971 = vmatpush1.bf16.msra.mxu0 %v448
    %972 = vmatprep.subr.bf16.mxu0 %v453
    %973 = vmatpush1.bf16.msra.mxu0 %v452
    %974 = vmatprep.subr.bf16.mxu0 %v457
    %975 = vmatpush1.bf16.msra.mxu0 %v456
    %976 = vmatprep.subr.bf16.mxu0 %v461
    %977 = vmatpush1.bf16.msra.mxu0 %v460
    %978 = vmatprep.subr.bf16.mxu0 %v465
    %979 = vmatpush1.bf16.msra.mxu0 %v464
    %980 = vmatprep.subr.bf16.mxu0 0
    %981 = vmatpush1.bf16.msra.mxu0 0
    %982 = vmatprep.subr.bf16.mxu0 0
    %983 = vmatpush1.bf16.msra.mxu0 0
    %984 = vmatprep.subr.bf16.mxu0 0
    %985 = vmatpush1.bf16.msra.mxu0 0
    %986 = vmatprep.subr.bf16.mxu0 0
    %987 = vmatpush1.bf16.msra.mxu0 0
    %988 = vmatprep.subr.bf16.mxu0 0
    %989 = vmatpush1.bf16.msra.mxu0 0
    %990 = vmatprep.subr.bf16.mxu0 0
    %991 = vmatpush1.bf16.msra.mxu0 0
    %992 = vmatprep.subr.bf16.mxu0 0
    %993 = vmatpush1.bf16.msra.mxu0 0
    %994 = vmatprep.subr.bf16.mxu0 0
    %995 = vmatpush1.bf16.msra.mxu0 0
    %996 = vmatprep.mubr.bf16.mxu0 0
    %997 = vmatmul.mubr.bf16.gmra.mrb[0].mxu0 %v963
    %v998 = vpop.f32.mrb[0].mxu0
    %v999 = vadd.f32 0.0, %v998
    %v1000 = vpop.f32.mrb[0].mxu0
    %v1001 = vadd.f32 0.0, %v1000
    %v1002 = vpop.f32.mrb[0].mxu0
    %v1003 = vpop.f32.mrb[0].mxu0
    %1004 = vdwg.mxu0
    %1005 = vmatprep.subr.bf16.mxu0 %v439
    %1006 = vmatpush1.bf16.msra.mxu0 %v438
    %1007 = vmatprep.subr.bf16.mxu0 %v443
    %1008 = vmatpush1.bf16.msra.mxu0 %v442
    %1009 = vmatprep.subr.bf16.mxu0 %v447
    %1010 = vmatpush1.bf16.msra.mxu0 %v446
    %1011 = vmatprep.subr.bf16.mxu0 %v451
    %1012 = vmatpush1.bf16.msra.mxu0 %v450
    %1013 = vmatprep.subr.bf16.mxu0 %v455
    %1014 = vmatpush1.bf16.msra.mxu0 %v454
    %1015 = vmatprep.subr.bf16.mxu0 %v459
    %1016 = vmatpush1.bf16.msra.mxu0 %v458
    %1017 = vmatprep.subr.bf16.mxu0 %v463
    %1018 = vmatpush1.bf16.msra.mxu0 %v462
    %1019 = vmatprep.subr.bf16.mxu0 %v467
    %1020 = vmatpush1.bf16.msra.mxu0 %v466
    %1021 = vmatprep.subr.bf16.mxu0 0
    %1022 = vmatpush1.bf16.msra.mxu0 0
    %1023 = vmatprep.subr.bf16.mxu0 0
    %1024 = vmatpush1.bf16.msra.mxu0 0
    %1025 = vmatprep.subr.bf16.mxu0 0
    %1026 = vmatpush1.bf16.msra.mxu0 0
    %1027 = vmatprep.subr.bf16.mxu0 0
    %1028 = vmatpush1.bf16.msra.mxu0 0
    %1029 = vmatprep.subr.bf16.mxu0 0
    %1030 = vmatpush1.bf16.msra.mxu0 0
    %1031 = vmatprep.subr.bf16.mxu0 0
    %1032 = vmatpush1.bf16.msra.mxu0 0
    %1033 = vmatprep.subr.bf16.mxu0 0
    %1034 = vmatpush1.bf16.msra.mxu0 0
    %1035 = vmatprep.subr.bf16.mxu0 0
    %1036 = vmatpush1.bf16.msra.mxu0 0
    %1037 = vmatprep.mubr.bf16.mxu0 0
    %1038 = vmatmul.mubr.bf16.gmra.mrb[0].mxu0 %v963
    %v1039 = vpop.f32.mrb[0].mxu0
    %v1040 = vadd.f32 0.0, %v1039
    %v1041 = vpop.f32.mrb[0].mxu0
    %v1042 = vadd.f32 0.0, %v1041
    %v1043 = vpop.f32.mrb[0].mxu0
    %v1044 = vpop.f32.mrb[0].mxu0
    %1045 = vdwg.mxu0
    %v1046 = vadd.f32 %v959, %v999
    %v1047 = vadd.f32 %v960, %v1001
    %v1048 = vadd.f32 %v961, %v1040
    %v1049 = vadd.f32 %v962, %v1042
    %v1050 = vxor.u32 %v1046, 2147483648
    %v1051 = vxor.u32 %v1047, 2147483648
    %v1052 = vxor.u32 %v1048, 2147483648
    %v1053 = vmul.f32 %v1050, 1.442695
    %v1054 = vpow.pop %v1053
    %v1055 = vmul.f32 %v1051, 1.442695
    %v1056 = vpow.pop %v1055
    %v1057 = vmul.f32 %v1052, 1.442695
    %v1058 = vpow.pop %v1057
    %v1059 = vadd.f32 %v1054, 1.0
    %v1060 = vadd.f32 %v1056, 1.0
    %v1061 = vadd.f32 %v1058, 1.0
    %v1062 = vrcp.pop %v1059
    %v1063 = vmul.f32 1.0, %v1062
    %v1064 = vrcp.pop %v1060
    %v1065 = vmul.f32 1.0, %v1064
    %v1066 = vrcp.pop %v1061
    %v1067 = vmul.f32 1.0, %v1066
    %v1068 = vtanh.pop %v1049
    %v1069 = vmul.f32 %v1065, %v955
    %v1070 = vmul.f32 %v1063, %v1068
    %v1071 = vadd.f32 %v1069, %v1070
    %v1072 = vtanh.pop %v1071
    %v1073 = vmul.f32 %v1067, %v1072
    %s1074 = scalar_lea.vmem [#allocation2], 160
    %v1075 = vld [vmem:[%s1074] sm:$0xff]
    %v1076 = vld [vmem:[%s1074 + $0x8] sm:$0xff]
    %v1077 = vld [vmem:[%s1074 + $0x10] sm:$0xff]
    %v1078 = vld [vmem:[%s1074 + $0x18] sm:$0xff]
    %v1079 = vpack.c.bf16 %v1073, %v1073
    %1080 = vmatprep.subr.bf16.mxu0 %v437
    %1081 = vmatpush1.bf16.msra.mxu0 %v436
    %1082 = vmatprep.subr.bf16.mxu0 %v441
    %1083 = vmatpush1.bf16.msra.mxu0 %v440
    %1084 = vmatprep.subr.bf16.mxu0 %v445
    %1085 = vmatpush1.bf16.msra.mxu0 %v444
    %1086 = vmatprep.subr.bf16.mxu0 %v449
    %1087 = vmatpush1.bf16.msra.mxu0 %v448
    %1088 = vmatprep.subr.bf16.mxu0 %v453
    %1089 = vmatpush1.bf16.msra.mxu0 %v452
    %1090 = vmatprep.subr.bf16.mxu0 %v457
    %1091 = vmatpush1.bf16.msra.mxu0 %v456
    %1092 = vmatprep.subr.bf16.mxu0 %v461
    %1093 = vmatpush1.bf16.msra.mxu0 %v460
    %1094 = vmatprep.subr.bf16.mxu0 %v465
    %1095 = vmatpush1.bf16.msra.mxu0 %v464
    %1096 = vmatprep.subr.bf16.mxu0 0
    %1097 = vmatpush1.bf16.msra.mxu0 0
    %1098 = vmatprep.subr.bf16.mxu0 0
    %1099 = vmatpush1.bf16.msra.mxu0 0
    %1100 = vmatprep.subr.bf16.mxu0 0
    %1101 = vmatpush1.bf16.msra.mxu0 0
    %1102 = vmatprep.subr.bf16.mxu0 0
    %1103 = vmatpush1.bf16.msra.mxu0 0
    %1104 = vmatprep.subr.bf16.mxu0 0
    %1105 = vmatpush1.bf16.msra.mxu0 0
    %1106 = vmatprep.subr.bf16.mxu0 0
    %1107 = vmatpush1.bf16.msra.mxu0 0
    %1108 = vmatprep.subr.bf16.mxu0 0
    %1109 = vmatpush1.bf16.msra.mxu0 0
    %1110 = vmatprep.subr.bf16.mxu0 0
    %1111 = vmatpush1.bf16.msra.mxu0 0
    %1112 = vmatprep.mubr.bf16.mxu0 0
    %1113 = vmatmul.mubr.bf16.gmra.mrb[0].mxu0 %v1079
    %v1114 = vpop.f32.mrb[0].mxu0
    %v1115 = vadd.f32 0.0, %v1114
    %v1116 = vpop.f32.mrb[0].mxu0
    %v1117 = vadd.f32 0.0, %v1116
    %v1118 = vpop.f32.mrb[0].mxu0
    %v1119 = vpop.f32.mrb[0].mxu0
    %1120 = vdwg.mxu0
    %1121 = vmatprep.subr.bf16.mxu0 %v439
    %1122 = vmatpush1.bf16.msra.mxu0 %v438
    %1123 = vmatprep.subr.bf16.mxu0 %v443
    %1124 = vmatpush1.bf16.msra.mxu0 %v442
    %1125 = vmatprep.subr.bf16.mxu0 %v447
    %1126 = vmatpush1.bf16.msra.mxu0 %v446
    %1127 = vmatprep.subr.bf16.mxu0 %v451
    %1128 = vmatpush1.bf16.msra.mxu0 %v450
    %1129 = vmatprep.subr.bf16.mxu0 %v455
    %1130 = vmatpush1.bf16.msra.mxu0 %v454
    %1131 = vmatprep.subr.bf16.mxu0 %v459
    %1132 = vmatpush1.bf16.msra.mxu0 %v458
    %1133 = vmatprep.subr.bf16.mxu0 %v463
    %1134 = vmatpush1.bf16.msra.mxu0 %v462
    %1135 = vmatprep.subr.bf16.mxu0 %v467
    %1136 = vmatpush1.bf16.msra.mxu0 %v466
    %1137 = vmatprep.subr.bf16.mxu0 0
    %1138 = vmatpush1.bf16.msra.mxu0 0
    %1139 = vmatprep.subr.bf16.mxu0 0
    %1140 = vmatpush1.bf16.msra.mxu0 0
    %1141 = vmatprep.subr.bf16.mxu0 0
    %1142 = vmatpush1.bf16.msra.mxu0 0
    %1143 = vmatprep.subr.bf16.mxu0 0
    %1144 = vmatpush1.bf16.msra.mxu0 0
    %1145 = vmatprep.subr.bf16.mxu0 0
    %1146 = vmatpush1.bf16.msra.mxu0 0
    %1147 = vmatprep.subr.bf16.mxu0 0
    %1148 = vmatpush1.bf16.msra.mxu0 0
    %1149 = vmatprep.subr.bf16.mxu0 0
    %1150 = vmatpush1.bf16.msra.mxu0 0
    %1151 = vmatprep.subr.bf16.mxu0 0
    %1152 = vmatpush1.bf16.msra.mxu0 0
    %1153 = vmatprep.mubr.bf16.mxu0 0
    %1154 = vmatmul.mubr.bf16.gmra.mrb[0].mxu0 %v1079
    %v1155 = vpop.f32.mrb[0].mxu0
    %v1156 = vadd.f32 0.0, %v1155
    %v1157 = vpop.f32.mrb[0].mxu0
    %v1158 = vadd.f32 0.0, %v1157
    %v1159 = vpop.f32.mrb[0].mxu0
    %v1160 = vpop.f32.mrb[0].mxu0
    %1161 = vdwg.mxu0
    %v1162 = vadd.f32 %v1075, %v1115
    %v1163 = vadd.f32 %v1076, %v1117
    %v1164 = vadd.f32 %v1077, %v1156
    %v1165 = vadd.f32 %v1078, %v1158
    %v1166 = vxor.u32 %v1162, 2147483648
    %v1167 = vxor.u32 %v1163, 2147483648
    %v1168 = vxor.u32 %v1164, 2147483648
    %v1169 = vmul.f32 %v1166, 1.442695
    %v1170 = vpow.pop %v1169
    %v1171 = vmul.f32 %v1167, 1.442695
    %v1172 = vpow.pop %v1171
    %v1173 = vmul.f32 %v1168, 1.442695
    %v1174 = vpow.pop %v1173
    %v1175 = vadd.f32 %v1170, 1.0
    %v1176 = vadd.f32 %v1172, 1.0
    %v1177 = vadd.f32 %v1174, 1.0
    %v1178 = vrcp.pop %v1175
    %v1179 = vmul.f32 1.0, %v1178
    %v1180 = vrcp.pop %v1176
    %v1181 = vmul.f32 1.0, %v1180
    %v1182 = vrcp.pop %v1177
    %v1183 = vmul.f32 1.0, %v1182
    %v1184 = vtanh.pop %v1165
    %v1185 = vmul.f32 %v1181, %v1071
    %v1186 = vmul.f32 %v1179, %v1184
    %v1187 = vadd.f32 %v1185, %v1186
    %v1188 = vtanh.pop %v1187
    %v1189 = vmul.f32 %v1183, %v1188
    %s1190 = scalar_lea.vmem [#allocation2], 192
    %v1191 = vld [vmem:[%s1190] sm:$0xff]
    %v1192 = vld [vmem:[%s1190 + $0x8] sm:$0xff]
    %v1193 = vld [vmem:[%s1190 + $0x10] sm:$0xff]
    %v1194 = vld [vmem:[%s1190 + $0x18] sm:$0xff]
    %v1195 = vpack.c.bf16 %v1189, %v1189
    %1196 = vmatprep.subr.bf16.mxu0 %v437
    %1197 = vmatpush1.bf16.msra.mxu0 %v436
    %1198 = vmatprep.subr.bf16.mxu0 %v441
    %1199 = vmatpush1.bf16.msra.mxu0 %v440
    %1200 = vmatprep.subr.bf16.mxu0 %v445
    %1201 = vmatpush1.bf16.msra.mxu0 %v444
    %1202 = vmatprep.subr.bf16.mxu0 %v449
    %1203 = vmatpush1.bf16.msra.mxu0 %v448
    %1204 = vmatprep.subr.bf16.mxu0 %v453
    %1205 = vmatpush1.bf16.msra.mxu0 %v452
    %1206 = vmatprep.subr.bf16.mxu0 %v457
    %1207 = vmatpush1.bf16.msra.mxu0 %v456
    %1208 = vmatprep.subr.bf16.mxu0 %v461
    %1209 = vmatpush1.bf16.msra.mxu0 %v460
    %1210 = vmatprep.subr.bf16.mxu0 %v465
    %1211 = vmatpush1.bf16.msra.mxu0 %v464
    %1212 = vmatprep.subr.bf16.mxu0 0
    %1213 = vmatpush1.bf16.msra.mxu0 0
    %1214 = vmatprep.subr.bf16.mxu0 0
    %1215 = vmatpush1.bf16.msra.mxu0 0
    %1216 = vmatprep.subr.bf16.mxu0 0
    %1217 = vmatpush1.bf16.msra.mxu0 0
    %1218 = vmatprep.subr.bf16.mxu0 0
    %1219 = vmatpush1.bf16.msra.mxu0 0
    %1220 = vmatprep.subr.bf16.mxu0 0
    %1221 = vmatpush1.bf16.msra.mxu0 0
    %1222 = vmatprep.subr.bf16.mxu0 0
    %1223 = vmatpush1.bf16.msra.mxu0 0
    %1224 = vmatprep.subr.bf16.mxu0 0
    %1225 = vmatpush1.bf16.msra.mxu0 0
    %1226 = vmatprep.subr.bf16.mxu0 0
    %1227 = vmatpush1.bf16.msra.mxu0 0
    %1228 = vmatprep.mubr.bf16.mxu0 0
    %1229 = vmatmul.mubr.bf16.gmra.mrb[0].mxu0 %v1195
    %v1230 = vpop.f32.mrb[0].mxu0
    %v1231 = vadd.f32 0.0, %v1230
    %v1232 = vpop.f32.mrb[0].mxu0
    %v1233 = vadd.f32 0.0, %v1232
    %v1234 = vpop.f32.mrb[0].mxu0
    %v1235 = vpop.f32.mrb[0].mxu0
    %1236 = vdwg.mxu0
    %1237 = vmatprep.subr.bf16.mxu0 %v439
    %1238 = vmatpush1.bf16.msra.mxu0 %v438
    %1239 = vmatprep.subr.bf16.mxu0 %v443
    %1240 = vmatpush1.bf16.msra.mxu0 %v442
    %1241 = vmatprep.subr.bf16.mxu0 %v447
    %1242 = vmatpush1.bf16.msra.mxu0 %v446
    %1243 = vmatprep.subr.bf16.mxu0 %v451
    %1244 = vmatpush1.bf16.msra.mxu0 %v450
    %1245 = vmatprep.subr.bf16.mxu0 %v455
    %1246 = vmatpush1.bf16.msra.mxu0 %v454
    %1247 = vmatprep.subr.bf16.mxu0 %v459
    %1248 = vmatpush1.bf16.msra.mxu0 %v458
    %1249 = vmatprep.subr.bf16.mxu0 %v463
    %1250 = vmatpush1.bf16.msra.mxu0 %v462
    %1251 = vmatprep.subr.bf16.mxu0 %v467
    %1252 = vmatpush1.bf16.msra.mxu0 %v466
    %1253 = vmatprep.subr.bf16.mxu0 0
    %1254 = vmatpush1.bf16.msra.mxu0 0
    %1255 = vmatprep.subr.bf16.mxu0 0
    %1256 = vmatpush1.bf16.msra.mxu0 0
    %1257 = vmatprep.subr.bf16.mxu0 0
    %1258 = vmatpush1.bf16.msra.mxu0 0
    %1259 = vmatprep.subr.bf16.mxu0 0
    %1260 = vmatpush1.bf16.msra.mxu0 0
    %1261 = vmatprep.subr.bf16.mxu0 0
    %1262 = vmatpush1.bf16.msra.mxu0 0
    %1263 = vmatprep.subr.bf16.mxu0 0
    %1264 = vmatpush1.bf16.msra.mxu0 0
    %1265 = vmatprep.subr.bf16.mxu0 0
    %1266 = vmatpush1.bf16.msra.mxu0 0
    %1267 = vmatprep.subr.bf16.mxu0 0
    %1268 = vmatpush1.bf16.msra.mxu0 0
    %1269 = vmatprep.mubr.bf16.mxu0 0
    %1270 = vmatmul.mubr.bf16.gmra.mrb[0].mxu0 %v1195
    %v1271 = vpop.f32.mrb[0].mxu0
    %v1272 = vadd.f32 0.0, %v1271
    %v1273 = vpop.f32.mrb[0].mxu0
    %v1274 = vadd.f32 0.0, %v1273
    %v1275 = vpop.f32.mrb[0].mxu0
    %v1276 = vpop.f32.mrb[0].mxu0
    %1277 = vdwg.mxu0
    %v1278 = vadd.f32 %v1191, %v1231
    %v1279 = vadd.f32 %v1192, %v1233
    %v1280 = vadd.f32 %v1193, %v1272
    %v1281 = vadd.f32 %v1194, %v1274
    %v1282 = vxor.u32 %v1278, 2147483648
    %v1283 = vxor.u32 %v1279, 2147483648
    %v1284 = vxor.u32 %v1280, 2147483648
    %v1285 = vmul.f32 %v1282, 1.442695
    %v1286 = vpow.pop %v1285
    %v1287 = vmul.f32 %v1283, 1.442695
    %v1288 = vpow.pop %v1287
    %v1289 = vmul.f32 %v1284, 1.442695
    %v1290 = vpow.pop %v1289
    %v1291 = vadd.f32 %v1286, 1.0
    %v1292 = vadd.f32 %v1288, 1.0
    %v1293 = vadd.f32 %v1290, 1.0
    %v1294 = vrcp.pop %v1291
    %v1295 = vmul.f32 1.0, %v1294
    %v1296 = vrcp.pop %v1292
    %v1297 = vmul.f32 1.0, %v1296
    %v1298 = vrcp.pop %v1293
    %v1299 = vmul.f32 1.0, %v1298
    %v1300 = vtanh.pop %v1281
    %v1301 = vmul.f32 %v1297, %v1187
    %v1302 = vmul.f32 %v1295, %v1300
    %v1303 = vadd.f32 %v1301, %v1302
    %v1304 = vtanh.pop %v1303
    %v1305 = vmul.f32 %v1299, %v1304
    %s1306 = scalar_lea.vmem [#allocation2], 224
    %v1307 = vld [vmem:[%s1306] sm:$0xff]
    %v1308 = vld [vmem:[%s1306 + $0x8] sm:$0xff]
    %v1309 = vld [vmem:[%s1306 + $0x10] sm:$0xff]
    %v1310 = vld [vmem:[%s1306 + $0x18] sm:$0xff]
    %v1311 = vpack.c.bf16 %v1305, %v1305
    %1312 = vmatprep.subr.bf16.mxu0 %v437
    %1313 = vmatpush1.bf16.msra.mxu0 %v436
    %1314 = vmatprep.subr.bf16.mxu0 %v441
    %1315 = vmatpush1.bf16.msra.mxu0 %v440
    %1316 = vmatprep.subr.bf16.mxu0 %v445
    %1317 = vmatpush1.bf16.msra.mxu0 %v444
    %1318 = vmatprep.subr.bf16.mxu0 %v449
    %1319 = vmatpush1.bf16.msra.mxu0 %v448
    %1320 = vmatprep.subr.bf16.mxu0 %v453
    %1321 = vmatpush1.bf16.msra.mxu0 %v452
    %1322 = vmatprep.subr.bf16.mxu0 %v457
    %1323 = vmatpush1.bf16.msra.mxu0 %v456
    %1324 = vmatprep.subr.bf16.mxu0 %v461
    %1325 = vmatpush1.bf16.msra.mxu0 %v460
    %1326 = vmatprep.subr.bf16.mxu0 %v465
    %1327 = vmatpush1.bf16.msra.mxu0 %v464
    %1328 = vmatprep.subr.bf16.mxu0 0
    %1329 = vmatpush1.bf16.msra.mxu0 0
    %1330 = vmatprep.subr.bf16.mxu0 0
    %1331 = vmatpush1.bf16.msra.mxu0 0
    %1332 = vmatprep.subr.bf16.mxu0 0
    %1333 = vmatpush1.bf16.msra.mxu0 0
    %1334 = vmatprep.subr.bf16.mxu0 0
    %1335 = vmatpush1.bf16.msra.mxu0 0
    %1336 = vmatprep.subr.bf16.mxu0 0
    %1337 = vmatpush1.bf16.msra.mxu0 0
    %1338 = vmatprep.subr.bf16.mxu0 0
    %1339 = vmatpush1.bf16.msra.mxu0 0
    %1340 = vmatprep.subr.bf16.mxu0 0
    %1341 = vmatpush1.bf16.msra.mxu0 0
    %1342 = vmatprep.subr.bf16.mxu0 0
    %1343 = vmatpush1.bf16.msra.mxu0 0
    %1344 = vmatprep.mubr.bf16.mxu0 0
    %1345 = vmatmul.mubr.bf16.gmra.mrb[0].mxu0 %v1311
    %v1346 = vpop.f32.mrb[0].mxu0
    %v1347 = vadd.f32 0.0, %v1346
    %v1348 = vpop.f32.mrb[0].mxu0
    %v1349 = vadd.f32 0.0, %v1348
    %v1350 = vpop.f32.mrb[0].mxu0
    %v1351 = vpop.f32.mrb[0].mxu0
    %1352 = vdwg.mxu0
    %1353 = vmatprep.subr.bf16.mxu0 %v439
    %1354 = vmatpush1.bf16.msra.mxu0 %v438
    %1355 = vmatprep.subr.bf16.mxu0 %v443
    %1356 = vmatpush1.bf16.msra.mxu0 %v442
    %1357 = vmatprep.subr.bf16.mxu0 %v447
    %1358 = vmatpush1.bf16.msra.mxu0 %v446
    %1359 = vmatprep.subr.bf16.mxu0 %v451
    %1360 = vmatpush1.bf16.msra.mxu0 %v450
    %1361 = vmatprep.subr.bf16.mxu0 %v455
    %1362 = vmatpush1.bf16.msra.mxu0 %v454
    %1363 = vmatprep.subr.bf16.mxu0 %v459
    %1364 = vmatpush1.bf16.msra.mxu0 %v458
    %1365 = vmatprep.subr.bf16.mxu0 %v463
    %1366 = vmatpush1.bf16.msra.mxu0 %v462
    %1367 = vmatprep.subr.bf16.mxu0 %v467
    %1368 = vmatpush1.bf16.msra.mxu0 %v466
    %1369 = vmatprep.subr.bf16.mxu0 0
    %1370 = vmatpush1.bf16.msra.mxu0 0
    %1371 = vmatprep.subr.bf16.mxu0 0
    %1372 = vmatpush1.bf16.msra.mxu0 0
    %1373 = vmatprep.subr.bf16.mxu0 0
    %1374 = vmatpush1.bf16.msra.mxu0 0
    %1375 = vmatprep.subr.bf16.mxu0 0
    %1376 = vmatpush1.bf16.msra.mxu0 0
    %1377 = vmatprep.subr.bf16.mxu0 0
    %1378 = vmatpush1.bf16.msra.mxu0 0
    %1379 = vmatprep.subr.bf16.mxu0 0
    %1380 = vmatpush1.bf16.msra.mxu0 0
    %1381 = vmatprep.subr.bf16.mxu0 0
    %1382 = vmatpush1.bf16.msra.mxu0 0
    %1383 = vmatprep.subr.bf16.mxu0 0
    %1384 = vmatpush1.bf16.msra.mxu0 0
    %1385 = vmatprep.mubr.bf16.mxu0 0
    %1386 = vmatmul.mubr.bf16.gmra.mrb[0].mxu0 %v1311
    %v1387 = vpop.f32.mrb[0].mxu0
    %v1388 = vadd.f32 0.0, %v1387
    %v1389 = vpop.f32.mrb[0].mxu0
    %v1390 = vadd.f32 0.0, %v1389
    %v1391 = vpop.f32.mrb[0].mxu0
    %v1392 = vpop.f32.mrb[0].mxu0
    %1393 = vdwg.mxu0
    %v1394 = vadd.f32 %v1307, %v1347
    %v1395 = vadd.f32 %v1308, %v1349
    %v1396 = vadd.f32 %v1309, %v1388
    %v1397 = vadd.f32 %v1310, %v1390
    %v1398 = vxor.u32 %v1394, 2147483648
    %v1399 = vxor.u32 %v1395, 2147483648
    %v1400 = vxor.u32 %v1396, 2147483648
    %v1401 = vmul.f32 %v1398, 1.442695
    %v1402 = vpow.pop %v1401
    %v1403 = vmul.f32 %v1399, 1.442695
    %v1404 = vpow.pop %v1403
    %v1405 = vmul.f32 %v1400, 1.442695
    %v1406 = vpow.pop %v1405
    %v1407 = vadd.f32 %v1402, 1.0
    %v1408 = vadd.f32 %v1404, 1.0
    %v1409 = vadd.f32 %v1406, 1.0
    %v1410 = vrcp.pop %v1407
    %v1411 = vmul.f32 1.0, %v1410
    %v1412 = vrcp.pop %v1408
    %v1413 = vmul.f32 1.0, %v1412
    %v1414 = vrcp.pop %v1409
    %v1415 = vmul.f32 1.0, %v1414
    %v1416 = vtanh.pop %v1397
    %v1417 = vmul.f32 %v1413, %v1303
    %v1418 = vmul.f32 %v1411, %v1416
    %v1419 = vadd.f32 %v1417, %v1418
    %v1420 = vtanh.pop %v1419
    %v1421 = vmul.f32 %v1415, %v1420
    %v1422 = vld [vmem:[%s4] sm:$0xff]
    %v1423 = vld [vmem:[%s4 + $0x8] sm:$0xff]
    %v1424 = vld [vmem:[%s4 + $0x10] sm:$0xff]
    %v1425 = vld [vmem:[%s4 + $0x18] sm:$0xff]
    %v1426 = vld [vmem:[%s4 + $0x20] sm:$0xff]
    %v1427 = vld [vmem:[%s4 + $0x28] sm:$0xff]
    %v1428 = vld [vmem:[%s4 + $0x30] sm:$0xff]
    %v1429 = vld [vmem:[%s4 + $0x38] sm:$0xff]
    %v1430 = vld [vmem:[%s4 + $0x40] sm:$0xff]
    %v1431 = vld [vmem:[%s4 + $0x48] sm:$0xff]
    %v1432 = vld [vmem:[%s4 + $0x50] sm:$0xff]
    %v1433 = vld [vmem:[%s4 + $0x58] sm:$0xff]
    %v1434 = vld [vmem:[%s4 + $0x60] sm:$0xff]
    %v1435 = vld [vmem:[%s4 + $0x68] sm:$0xff]
    %v1436 = vld [vmem:[%s4 + $0x70] sm:$0xff]
    %v1437 = vld [vmem:[%s4 + $0x78] sm:$0xff]
    %v1438 = vld [vmem:[%s5] sm:$0x1]
    %v1440 = vlaneseq
    %v1441 = vshrl.u32 %v1440, 7
    %v1442 = vsub.s32 0, %v1441
    %v1443 = vrot.slane %v1438, %v1442
    %1445 = vmatprep.subr.mxu0 0.0
    %1446 = vmatpush1.msra.mxu0 %v1422
    %1447 = vmatprep.subr.mxu0 0.0
    %1448 = vmatpush1.msra.mxu0 %v1423
    %1449 = vmatprep.subr.mxu0 0.0
    %1450 = vmatpush1.msra.mxu0 %v1424
    %1451 = vmatprep.subr.mxu0 0.0
    %1452 = vmatpush1.msra.mxu0 %v1425
    %1453 = vmatprep.subr.mxu0 0.0
    %1454 = vmatpush1.msra.mxu0 %v1426
    %1455 = vmatprep.subr.mxu0 0.0
    %1456 = vmatpush1.msra.mxu0 %v1427
    %1457 = vmatprep.subr.mxu0 0.0
    %1458 = vmatpush1.msra.mxu0 %v1428
    %1459 = vmatprep.subr.mxu0 0.0
    %1460 = vmatpush1.msra.mxu0 %v1429
    %1461 = vmatprep.subr.mxu0 0.0
    %1462 = vmatpush1.msra.mxu0 %v1430
    %1463 = vmatprep.subr.mxu0 0.0
    %1464 = vmatpush1.msra.mxu0 %v1431
    %1465 = vmatprep.subr.mxu0 0.0
    %1466 = vmatpush1.msra.mxu0 %v1432
    %1467 = vmatprep.subr.mxu0 0.0
    %1468 = vmatpush1.msra.mxu0 %v1433
    %1469 = vmatprep.subr.mxu0 0.0
    %1470 = vmatpush1.msra.mxu0 %v1434
    %1471 = vmatprep.subr.mxu0 0.0
    %1472 = vmatpush1.msra.mxu0 %v1435
    %1473 = vmatprep.subr.mxu0 0.0
    %1474 = vmatpush1.msra.mxu0 %v1436
    %1475 = vmatprep.subr.mxu0 0.0
    %1476 = vmatpush1.msra.mxu0 %v1437
    %1477 = vmatprep.subr.mxu0 0.0
    %1478 = vmatpush1.msra.mxu0 0.0
    %1479 = vmatprep.subr.mxu0 0.0
    %1480 = vmatpush1.msra.mxu0 0.0
    %1481 = vmatprep.subr.mxu0 0.0
    %1482 = vmatpush1.msra.mxu0 0.0
    %1483 = vmatprep.subr.mxu0 0.0
    %1484 = vmatpush1.msra.mxu0 0.0
    %1485 = vmatprep.subr.mxu0 0.0
    %1486 = vmatpush1.msra.mxu0 0.0
    %1487 = vmatprep.subr.mxu0 0.0
    %1488 = vmatpush1.msra.mxu0 0.0
    %1489 = vmatprep.subr.mxu0 0.0
    %1490 = vmatpush1.msra.mxu0 0.0
    %1491 = vmatprep.subr.mxu0 0.0
    %1492 = vmatpush1.msra.mxu0 0.0
    %1493 = vmatprep.subr.mxu0 0.0
    %1494 = vmatpush1.msra.mxu0 0.0
    %1495 = vmatprep.subr.mxu0 0.0
    %1496 = vmatpush1.msra.mxu0 0.0
    %1497 = vmatprep.subr.mxu0 0.0
    %1498 = vmatpush1.msra.mxu0 0.0
    %1499 = vmatprep.subr.mxu0 0.0
    %1500 = vmatpush1.msra.mxu0 0.0
    %1501 = vmatprep.subr.mxu0 0.0
    %1502 = vmatpush1.msra.mxu0 0.0
    %1503 = vmatprep.subr.mxu0 0.0
    %1504 = vmatpush1.msra.mxu0 0.0
    %1505 = vmatprep.subr.mxu0 0.0
    %1506 = vmatpush1.msra.mxu0 0.0
    %1507 = vmatprep.subr.mxu0 0.0
    %1508 = vmatpush1.msra.mxu0 0.0
    %1509 = vmatprep.mubr.f32.mxu0 0.0
    %1510 = vmatmul.mubr.f32.gmra.mrb[0].mxu0 %v1421
    %v1511 = vpop.f32.mrb[0].mxu0
    %v1512 = vadd.f32 %v1443, %v1511
    %v1513 = vpop.f32.mrb[0].mxu0
    %1514 = vdwg.mxu0
    %vm1515 = vcmask 25600
    %v1516 = vsel %vm1515, %v1512, -inf
    %1517 = vmax.xlane.f32.xlu0 %v1516
    %v1518 = vpop.xlane.xlu0 %1517
    %v1519 = vsub.f32 %v1512, %v1518
    %v1520 = vmul.f32 %v1519, 1.442695
    %v1521 = vpow.pop %v1520
    %v1522 = vsel %vm1515, %v1521, 0.0
    %1523 = vadd.xlane.f32.xlu0 %v1522
    %v1524 = vpop.xlane.xlu0 %1523
    %v1525 = vrcp.pop %v1524
    %v1526 = vmul.f32 %v1521, %v1525
    %1527 = vst.msk [vmem:[#allocation6] sm:$0x3] %vm1515, %v1526
    // Predicated region
    $region30: #{tpu_custom_call.1} parent=1 // pred_check
      _
    $region31: #{tpu_custom_call.1} parent=1 // pred_check_branch
      %1529 = sbr.rel (0) target = $region33
    $region32: #{tpu_custom_call.1} parent=1 // pred_region
      %s1531 = ssub.s32 32, 32
      %1532 = vsyncadd [#allocation5], %s1531
      %s1534 = sshll.u32 [#allocation6], 4
      %s1535 = int_to_ptr.vmem [resolvable:$true] %s1534
      %1537 = dma.vmem_to_hbm [thread:$0]  %s1535, 32, %s6, [#allocation5]
    $region33: #{tpu_custom_call.1} parent=1 // pred_fallthru
      _
    // Predicated region
    $region34: #{tpu_custom_call.1} parent=1 // pred_check
      _
    $region35: #{tpu_custom_call.1} parent=1 // pred_check_branch
      %1539 = sbr.rel (0) target = $region37
    $region36: #{tpu_custom_call.1} parent=1 // pred_region
      %1540 = dma.done [#allocation5], 32
    $region37: #{tpu_custom_call.1} parent=1 // pred_fallthru
      _
    %1541 = vsyncpa [#allocation4], 1
    %1542 = vsyncpa [#allocation5], 1

</llo_original>
